<compile_context>
chip_gen: v7x
topology: tpu7x:2x2x1
jax: 0.10.0
libtpu: 0.0.40
codegen_flags: <defaults>
</compile_context>

<pallas_src>
import functools

import jax
import jax.numpy as jnp
from jax.experimental import pallas as pl
from jax.experimental.pallas import tpu as pltpu

FEATURES_SZ = 14
GENERAL_SZ = 7
HIDDEN_SZ = 64


def _get_depth(sz):
    for i in range(10):
        if 2 ** i == sz + 2:
            return i - 1
    raise AssertionError("invalid number of tree nodes")


# ---------------------------------------------------------------------------
# Fused Pallas kernel: the entire RecursiveLayer forward for one batch tile.
# ---------------------------------------------------------------------------
def _fused_kernel(feat_ref, gen_ref,
                  We_ref, be_ref, Wm1_ref, bm1_ref, Wm2_ref, bm2_ref,
                  Wg1_ref, bg1_ref, Wg2_ref, bg2_ref,
                  Wf1_ref, bf1_ref, Wf2_ref, bf2_ref,
                  out_ref, *scratch, depth):
    f32 = jnp.float32
    bf16 = jnp.bfloat16
    H = HIDDEN_SZ

    def mm(a, w):
        return jnp.dot(a, w, preferred_element_type=f32)

    def relu(x):
        return jnp.maximum(x, 0.0)

    tb = gen_ref.shape[0]

    if depth >= 1:
        enc_ref, child_ref = scratch          # (n*tb, H) bf16, (2^(depth-1)*tb, 2H) bf16
        n = feat_ref.shape[0]

        # ---- encode_features for ALL tree nodes in ONE dot: (n*tb,14)@(14,64) ----
        x = feat_ref[...].reshape(n * tb, FEATURES_SZ)                     # bf16
        enc = relu(mm(x, We_ref[...]) + be_ref[...])                       # (n*tb,H) f32
        enc_ref[...] = enc.astype(bf16)

        # ---- tree levels, statically unrolled; <=3 batched dots per level ----
        for d in range(depth, 0, -1):
            m = 2 ** d                     # nodes at this level
            l = m - 2                      # first flat node index of this level
            M = m * tb
            cur = enc_ref[l * tb:(l + m) * tb, :]                          # (M,H) bf16
            h = mm(cur, Wm1_ref[:H, :])                                    # (M,3H) f32
            if d < depth:                  # leaf level: children are exactly zero
                ch = child_ref[:M, :]                                      # (M,2H) bf16
                h = h + mm(ch, Wm1_ref[H:, :])                             # one dot for L+R
            h = relu(h + bm1_ref[...])
            o = relu(mm(h.astype(bf16), Wm2_ref[...]) + bm2_ref[...])      # (M,H) f32
            o = o.astype(bf16)
            # scatter node pair (2j, 2j+1) lane-adjacent into parent j's child row
            for j in range(m // 2):
                child_ref[j * tb:(j + 1) * tb, :H] = o[(2 * j) * tb:(2 * j + 1) * tb, :]
                child_ref[j * tb:(j + 1) * tb, H:] = o[(2 * j + 1) * tb:(2 * j + 2) * tb, :]

        vals = child_ref[:tb, :]                                           # (tb,2H) bf16
    else:
        # degenerate tree (no feature nodes): values stay zero
        vals = jnp.zeros((tb, 2 * H), bf16)

    # ---- encode_general: Linear(7->128) ReLU Linear(128->64) ReLU ----
    g = relu(mm(gen_ref[...], Wg1_ref[...]) + bg1_ref[...])                # (tb,2H)
    g = relu(mm(g.astype(bf16), Wg2_ref[...]) + bg2_ref[...])              # (tb,H)

    # ---- final: Linear(192->128) ReLU Linear(128->out_pad), concat-free ----
    h = mm(g.astype(bf16), Wf1_ref[:H, :]) + mm(vals, Wf1_ref[H:, :]) + bf1_ref[...]
    h = relu(h)                                                            # (tb,128)
    out_ref[...] = (mm(h.astype(bf16), Wf2_ref[...]) + bf2_ref[...]).astype(out_ref.dtype)


# ---------------------------------------------------------------------------
# Wrapper: layout plumbing + one pallas_call
# ---------------------------------------------------------------------------
def recursive_layer_forward(state, p, *, tile_rows=256):
    b, ssz = state.shape
    n = (ssz - GENERAL_SZ) // FEATURES_SZ
    depth = _get_depth(n)
    out_sz = p["Wf2_w"].shape[1]

    def rup(x, m):
        return (x + m - 1) // m * m

    ALIGN = 16                              # bf16 sublane packing (16,128) tiles
    b_al = rup(b, ALIGN)
    # batch tile: at most tile_rows, at most ~half the batch so the grid has >= 2
    # steps (keeps both v7x TensorCores busy); 16-aligned rows.
    half = rup((b_al + 1) // 2, ALIGN)
    tb = max(ALIGN, min(rup(tile_rows, ALIGN), half))
    num_steps = max(2, -(-b_al // tb))
    b_pad = num_steps * tb
    out_pad = rup(out_sz, 128)              # lane-dense output slab

    bf16 = jnp.bfloat16
    # bf16 activations in HBM (halves input DMA); MXU accumulates in f32.
    general = state[:, :GENERAL_SZ].astype(bf16)
    if n > 0:
        feat3 = (state[:, GENERAL_SZ:].reshape(b, n, FEATURES_SZ)
                 .transpose(1, 0, 2).astype(bf16))                # (n, b, 14) node-major
    else:
        feat3 = jnp.zeros((1, b, FEATURES_SZ), bf16)              # dummy (degenerate tree)
    if b_pad != b:
        general = jnp.pad(general, ((0, b_pad - b), (0, 0)))
        feat3 = jnp.pad(feat3, ((0, 0), (0, b_pad - b), (0, 0)))

    Wf2p = jnp.zeros((p["Wf2_w"].shape[0], out_pad), bf16).at[:, :out_sz].set(
        p["Wf2_w"].astype(bf16))
    bf2p = jnp.zeros((1, out_pad), jnp.float32).at[:, :out_sz].set(p["Wf2_b"])

    weights = [
        p["We_w"].astype(bf16), p["We_b"],
        p["Wm1_w"].astype(bf16), p["Wm1_b"],
        p["Wm2_w"].astype(bf16), p["Wm2_b"],
        p["Wg1_w"].astype(bf16), p["Wg1_b"],
        p["Wg2_w"].astype(bf16), p["Wg2_b"],
        p["Wf1_w"].astype(bf16), p["Wf1_b"],
        Wf2p, bf2p,
    ]

    def full2d(a):  # weights/biases: full block, VMEM-resident across the grid
        return pl.BlockSpec(a.shape, lambda i: (0, 0))

    in_specs = [
        pl.BlockSpec((feat3.shape[0], tb, FEATURES_SZ), lambda i: (0, i, 0)),
        pl.BlockSpec((tb, GENERAL_SZ), lambda i: (i, 0)),
    ] + [full2d(a) for a in weights]

    if depth >= 1:
        scratch = [
            pltpu.VMEM((n * tb, HIDDEN_SZ), bf16),                       # encoded features
            pltpu.VMEM((max(2 ** (depth - 1), 1) * tb, 2 * HIDDEN_SZ), bf16),  # child pairs
        ]
    else:
        scratch = []

    out = pl.pallas_call(
        functools.partial(_fused_kernel, depth=depth),
        grid=(b_pad // tb,),
        in_specs=in_specs,
        out_specs=pl.BlockSpec((tb, out_pad), lambda i: (i, 0)),
        out_shape=jax.ShapeDtypeStruct((b_pad, out_pad), jnp.float32),
        scratch_shapes=scratch,
        compiler_params=pltpu.CompilerParams(dimension_semantics=("parallel",)),
    )(feat3, general, *weights)

    return out[:b, :out_sz]


# ---------------------------------------------------------------------------
# Pure-JAX reference (f32) for correctness check
# ---------------------------------------------------------------------------
def recursive_layer_reference(state, p):
    b = state.shape[0]
    n = (state.shape[1] - GENERAL_SZ) // FEATURES_SZ
    depth = _get_depth(n)
    relu = lambda x: jnp.maximum(x, 0.0)

    general = state[:, :GENERAL_SZ]
    feats = relu(state[:, GENERAL_SZ:].reshape(b, n, FEATURES_SZ) @ p["We_w"] + p["We_b"][0])
    merged = jnp.zeros((b, 2 ** (depth + 1), HIDDEN_SZ), jnp.float32)
    for d in range(depth, 0, -1):
        l, r = 2 ** d - 2, 2 ** (d + 1) - 2
        cur = feats[:, l:r]
        children = merged.reshape(b, 2 ** d, 2 * HIDDEN_SZ)
        x = jnp.concatenate([cur, children], axis=2)
        h = relu(x @ p["Wm1_w"] + p["Wm1_b"][0])
        merged = relu(h @ p["Wm2_w"] + p["Wm2_b"][0])
    g = relu(general @ p["Wg1_w"] + p["Wg1_b"][0])
    g = relu(g @ p["Wg2_w"] + p["Wg2_b"][0])
    values = merged.reshape(b, 2 * HIDDEN_SZ)
    x = jnp.concatenate([g, values], axis=1)
    h = relu(x @ p["Wf1_w"] + p["Wf1_b"][0])
    return h @ p["Wf2_w"] + p["Wf2_b"][0]


# ---------------------------------------------------------------------------
# Deterministic parameter init (PyTorch nn.Linear-style uniform)
# ---------------------------------------------------------------------------
def init_params(key, out_sz):
    def linear(k, fan_in, fan_out):
        kw, kb = jax.random.split(k)
        bound = 1.0 / (fan_in ** 0.5)
        w = jax.random.uniform(kw, (fan_in, fan_out), jnp.float32, -bound, bound)
        b = jax.random.uniform(kb, (1, fan_out), jnp.float32, -bound, bound)
        return w, b

    keys = jax.random.split(key, 7)
    p = {}
    p["We_w"], p["We_b"] = linear(keys[0], FEATURES_SZ, HIDDEN_SZ)
    p["Wm1_w"], p["Wm1_b"] = linear(keys[1], 3 * HIDDEN_SZ, 3 * HIDDEN_SZ)
    p["Wm2_w"], p["Wm2_b"] = linear(keys[2], 3 * HIDDEN_SZ, HIDDEN_SZ)
    p["Wg1_w"], p["Wg1_b"] = linear(keys[3], GENERAL_SZ, 2 * HIDDEN_SZ)
    p["Wg2_w"], p["Wg2_b"] = linear(keys[4], 2 * HIDDEN_SZ, HIDDEN_SZ)
    p["Wf1_w"], p["Wf1_b"] = linear(keys[5], 2 * HIDDEN_SZ + HIDDEN_SZ, 128)
    p["Wf2_w"], p["Wf2_b"] = linear(keys[6], 128, out_sz)
    return p


if __name__ == "__main__":
    key = jax.random.PRNGKey(0)
    depth = 2
    num_nodes = 2 ** (depth + 1) - 2          # 6 tree nodes
    out_sz = 5
    batch = 4
    state_sz = GENERAL_SZ + num_nodes * FEATURES_SZ  # 7 + 6*14 = 91

    kp, kx = jax.random.split(key)
    params = init_params(kp, out_sz)
    state = jax.random.normal(kx, (batch, state_sz), jnp.float32)

    out = jax.jit(recursive_layer_forward)(state, params)
    out = jax.block_until_ready(out)

    ref = recursive_layer_reference(state, params)
    assert out.shape == (batch, out_sz)
    # bf16 MXU operands with f32 accumulation -> compare against f32 reference at 2e-2.
    assert jnp.allclose(out, ref, rtol=2e-2, atol=2e-2), "Pallas output mismatch vs reference"

    print("KERNEL_OK")
</pallas_src>

<mosaic_0001>
module attributes {stable_mosaic.version = 11 : i64} {
  func.func @_fused_kernel(%arg0: i32, %arg1: memref<6x16x14xbf16, #tpu.memory_space<vmem>>, %arg2: memref<16x7xbf16, #tpu.memory_space<vmem>>, %arg3: memref<14x64xbf16, #tpu.memory_space<vmem>>, %arg4: memref<1x64xf32, #tpu.memory_space<vmem>>, %arg5: memref<192x192xbf16, #tpu.memory_space<vmem>>, %arg6: memref<1x192xf32, #tpu.memory_space<vmem>>, %arg7: memref<192x64xbf16, #tpu.memory_space<vmem>>, %arg8: memref<1x64xf32, #tpu.memory_space<vmem>>, %arg9: memref<7x128xbf16, #tpu.memory_space<vmem>>, %arg10: memref<1x128xf32, #tpu.memory_space<vmem>>, %arg11: memref<128x64xbf16, #tpu.memory_space<vmem>>, %arg12: memref<1x64xf32, #tpu.memory_space<vmem>>, %arg13: memref<192x128xbf16, #tpu.memory_space<vmem>>, %arg14: memref<1x128xf32, #tpu.memory_space<vmem>>, %arg15: memref<128x128xbf16, #tpu.memory_space<vmem>>, %arg16: memref<1x128xf32, #tpu.memory_space<vmem>>, %arg17: memref<16x128xf32, #tpu.memory_space<vmem>>, %arg18: memref<96x64xbf16, #tpu.memory_space<vmem>>, %arg19: memref<32x128xbf16, #tpu.memory_space<vmem>>) attributes {dimension_semantics = [#tpu.dimension_semantics<parallel>], iteration_bounds = array<i64: 2>, scalar_prefetch = 0 : i64, scratch_operands = 2 : i64, tpu.core_type = #tpu.core_type<tc>, window_params = [{transform_indices = @transform_0, window_bounds = array<i64: 6, 16, 14>}, {transform_indices = @transform_1, window_bounds = array<i64: 16, 7>}, {pipeline_mode = #tpu.pipeline_mode<synchronous>, transform_indices = @transform_2, window_bounds = array<i64: 14, 64>}, {pipeline_mode = #tpu.pipeline_mode<synchronous>, transform_indices = @transform_3, window_bounds = array<i64: 1, 64>}, {pipeline_mode = #tpu.pipeline_mode<synchronous>, transform_indices = @transform_4, window_bounds = array<i64: 192, 192>}, {pipeline_mode = #tpu.pipeline_mode<synchronous>, transform_indices = @transform_5, window_bounds = array<i64: 1, 192>}, {pipeline_mode = #tpu.pipeline_mode<synchronous>, transform_indices = @transform_6, window_bounds = array<i64: 192, 64>}, {pipeline_mode = #tpu.pipeline_mode<synchronous>, transform_indices = @transform_7, window_bounds = array<i64: 1, 64>}, {pipeline_mode = #tpu.pipeline_mode<synchronous>, transform_indices = @transform_8, window_bounds = array<i64: 7, 128>}, {pipeline_mode = #tpu.pipeline_mode<synchronous>, transform_indices = @transform_9, window_bounds = array<i64: 1, 128>}, {pipeline_mode = #tpu.pipeline_mode<synchronous>, transform_indices = @transform_10, window_bounds = array<i64: 128, 64>}, {pipeline_mode = #tpu.pipeline_mode<synchronous>, transform_indices = @transform_11, window_bounds = array<i64: 1, 64>}, {pipeline_mode = #tpu.pipeline_mode<synchronous>, transform_indices = @transform_12, window_bounds = array<i64: 192, 128>}, {pipeline_mode = #tpu.pipeline_mode<synchronous>, transform_indices = @transform_13, window_bounds = array<i64: 1, 128>}, {pipeline_mode = #tpu.pipeline_mode<synchronous>, transform_indices = @transform_14, window_bounds = array<i64: 128, 128>}, {pipeline_mode = #tpu.pipeline_mode<synchronous>, transform_indices = @transform_15, window_bounds = array<i64: 1, 128>}, {transform_indices = @transform_16, window_bounds = array<i64: 16, 128>}]} {
    %c0 = arith.constant 0 : index
    %c0_0 = arith.constant 0 : index
    %c0_1 = arith.constant 0 : index
    %0 = vector.load %arg1[%c0, %c0_0, %c0_1] : memref<6x16x14xbf16, #tpu.memory_space<vmem>>, vector<6x16x14xbf16>
    %1 = vector.shape_cast %0 : vector<6x16x14xbf16> to vector<96x14xbf16>
    %c0_2 = arith.constant 0 : index
    %c0_3 = arith.constant 0 : index
    %2 = vector.load %arg3[%c0_2, %c0_3] : memref<14x64xbf16, #tpu.memory_space<vmem>>, vector<14x64xbf16>
    %cst = arith.constant dense<0.000000e+00> : vector<96x64xf32>
    %3 = tpu.matmul %1, %2, %cst {dimension_numbers = #tpu.dot_dimension_numbers<[1], [0], [0], [1], [0, 0, 1, 1], [], []>} : vector<96x14xbf16>, vector<14x64xbf16>, vector<96x64xf32> -> vector<96x64xf32>
    %c0_4 = arith.constant 0 : index
    %c0_5 = arith.constant 0 : index
    %4 = vector.load %arg4[%c0_4, %c0_5] : memref<1x64xf32, #tpu.memory_space<vmem>>, vector<1x64xf32>
    %5 = vector.broadcast %4 : vector<1x64xf32> to vector<96x64xf32>
    %6 = arith.addf %3, %5 : vector<96x64xf32>
    %cst_6 = arith.constant 0.000000e+00 : f32
    %7 = vector.broadcast %cst_6 : f32 to vector<96x64xf32>
    %8 = arith.maximumf %6, %7 : vector<96x64xf32>
    %9 = arith.truncf %8 : vector<96x64xf32> to vector<96x64xbf16>
    %c0_7 = arith.constant 0 : index
    %c0_8 = arith.constant 0 : index
    %10 = vector.load %arg18[%c0_7, %c0_8] : memref<96x64xbf16, #tpu.memory_space<vmem>>, vector<96x64xbf16>
    tpu.vector_store %arg18[%c0_7, %c0_8], %9 {strides = array<i32>} : memref<96x64xbf16, #tpu.memory_space<vmem>>, vector<96x64xbf16>,
    %c32 = arith.constant 32 : index
    %c0_9 = arith.constant 0 : index
    %11 = vector.load %arg18[%c32, %c0_9] : memref<96x64xbf16, #tpu.memory_space<vmem>>, vector<64x64xbf16>
    %c0_10 = arith.constant 0 : index
    %c0_11 = arith.constant 0 : index
    %12 = vector.load %arg5[%c0_10, %c0_11] : memref<192x192xbf16, #tpu.memory_space<vmem>>, vector<64x192xbf16>
    %cst_12 = arith.constant dense<0.000000e+00> : vector<64x192xf32>
    %13 = tpu.matmul %11, %12, %cst_12 {dimension_numbers = #tpu.dot_dimension_numbers<[1], [0], [0], [1], [0, 0, 1, 1], [], []>} : vector<64x64xbf16>, vector<64x192xbf16>, vector<64x192xf32> -> vector<64x192xf32>
    %c0_13 = arith.constant 0 : index
    %c0_14 = arith.constant 0 : index
    %14 = vector.load %arg6[%c0_13, %c0_14] : memref<1x192xf32, #tpu.memory_space<vmem>>, vector<1x192xf32>
    %15 = vector.broadcast %14 : vector<1x192xf32> to vector<64x192xf32>
    %16 = arith.addf %13, %15 : vector<64x192xf32>
    %cst_15 = arith.constant 0.000000e+00 : f32
    %17 = vector.broadcast %cst_15 : f32 to vector<64x192xf32>
    %18 = arith.maximumf %16, %17 : vector<64x192xf32>
    %19 = arith.truncf %18 : vector<64x192xf32> to vector<64x192xbf16>
    %c0_16 = arith.constant 0 : index
    %c0_17 = arith.constant 0 : index
    %20 = vector.load %arg7[%c0_16, %c0_17] : memref<192x64xbf16, #tpu.memory_space<vmem>>, vector<192x64xbf16>
    %cst_18 = arith.constant dense<0.000000e+00> : vector<64x64xf32>
    %21 = tpu.matmul %19, %20, %cst_18 {dimension_numbers = #tpu.dot_dimension_numbers<[1], [0], [0], [1], [0, 0, 1, 1], [], []>} : vector<64x192xbf16>, vector<192x64xbf16>, vector<64x64xf32> -> vector<64x64xf32>
    %c0_19 = arith.constant 0 : index
    %c0_20 = arith.constant 0 : index
    %22 = vector.load %arg8[%c0_19, %c0_20] : memref<1x64xf32, #tpu.memory_space<vmem>>, vector<1x64xf32>
    %23 = vector.broadcast %22 : vector<1x64xf32> to vector<64x64xf32>
    %24 = arith.addf %21, %23 : vector<64x64xf32>
    %cst_21 = arith.constant 0.000000e+00 : f32
    %25 = vector.broadcast %cst_21 : f32 to vector<64x64xf32>
    %26 = arith.maximumf %24, %25 : vector<64x64xf32>
    %27 = arith.truncf %26 : vector<64x64xf32> to vector<64x64xbf16>
    %28 = vector.extract_strided_slice %27 {offsets = [0, 0], sizes = [16, 64], strides = [1, 1]} : vector<64x64xbf16> to vector<16x64xbf16>
    %c0_22 = arith.constant 0 : index
    %c0_23 = arith.constant 0 : index
    %29 = vector.load %arg19[%c0_22, %c0_23] : memref<32x128xbf16, #tpu.memory_space<vmem>>, vector<16x64xbf16>
    tpu.vector_store %arg19[%c0_22, %c0_23], %28 {strides = array<i32>} : memref<32x128xbf16, #tpu.memory_space<vmem>>, vector<16x64xbf16>,
    %30 = vector.extract_strided_slice %27 {offsets = [16, 0], sizes = [16, 64], strides = [1, 1]} : vector<64x64xbf16> to vector<16x64xbf16>
    %c0_24 = arith.constant 0 : index
    %c64 = arith.constant 64 : index
    %31 = vector.load %arg19[%c0_24, %c64] : memref<32x128xbf16, #tpu.memory_space<vmem>>, vector<16x64xbf16>
    tpu.vector_store %arg19[%c0_24, %c64], %30 {strides = array<i32>} : memref<32x128xbf16, #tpu.memory_space<vmem>>, vector<16x64xbf16>,
    %32 = vector.extract_strided_slice %27 {offsets = [32, 0], sizes = [16, 64], strides = [1, 1]} : vector<64x64xbf16> to vector<16x64xbf16>
    %c16 = arith.constant 16 : index
    %c0_25 = arith.constant 0 : index
    %33 = vector.load %arg19[%c16, %c0_25] : memref<32x128xbf16, #tpu.memory_space<vmem>>, vector<16x64xbf16>
    tpu.vector_store %arg19[%c16, %c0_25], %32 {strides = array<i32>} : memref<32x128xbf16, #tpu.memory_space<vmem>>, vector<16x64xbf16>,
    %34 = vector.extract_strided_slice %27 {offsets = [48, 0], sizes = [16, 64], strides = [1, 1]} : vector<64x64xbf16> to vector<16x64xbf16>
    %c16_26 = arith.constant 16 : index
    %c64_27 = arith.constant 64 : index
    %35 = vector.load %arg19[%c16_26, %c64_27] : memref<32x128xbf16, #tpu.memory_space<vmem>>, vector<16x64xbf16>
    tpu.vector_store %arg19[%c16_26, %c64_27], %34 {strides = array<i32>} : memref<32x128xbf16, #tpu.memory_space<vmem>>, vector<16x64xbf16>,
    %c0_28 = arith.constant 0 : index
    %c0_29 = arith.constant 0 : index
    %36 = vector.load %arg18[%c0_28, %c0_29] : memref<96x64xbf16, #tpu.memory_space<vmem>>, vector<32x64xbf16>
    %c0_30 = arith.constant 0 : index
    %c0_31 = arith.constant 0 : index
    %37 = vector.load %arg5[%c0_30, %c0_31] : memref<192x192xbf16, #tpu.memory_space<vmem>>, vector<64x192xbf16>
    %cst_32 = arith.constant dense<0.000000e+00> : vector<32x192xf32>
    %38 = tpu.matmul %36, %37, %cst_32 {dimension_numbers = #tpu.dot_dimension_numbers<[1], [0], [0], [1], [0, 0, 1, 1], [], []>} : vector<32x64xbf16>, vector<64x192xbf16>, vector<32x192xf32> -> vector<32x192xf32>
    %c0_33 = arith.constant 0 : index
    %c0_34 = arith.constant 0 : index
    %39 = vector.load %arg19[%c0_33, %c0_34] : memref<32x128xbf16, #tpu.memory_space<vmem>>, vector<32x128xbf16>
    %c64_35 = arith.constant 64 : index
    %c0_36 = arith.constant 0 : index
    %40 = vector.load %arg5[%c64_35, %c0_36] : memref<192x192xbf16, #tpu.memory_space<vmem>>, vector<128x192xbf16>
    %cst_37 = arith.constant dense<0.000000e+00> : vector<32x192xf32>
    %41 = tpu.matmul %39, %40, %cst_37 {dimension_numbers = #tpu.dot_dimension_numbers<[1], [0], [0], [1], [0, 0, 1, 1], [], []>} : vector<32x128xbf16>, vector<128x192xbf16>, vector<32x192xf32> -> vector<32x192xf32>
    %42 = arith.addf %38, %41 : vector<32x192xf32>
    %c0_38 = arith.constant 0 : index
    %c0_39 = arith.constant 0 : index
    %43 = vector.load %arg6[%c0_38, %c0_39] : memref<1x192xf32, #tpu.memory_space<vmem>>, vector<1x192xf32>
    %44 = vector.broadcast %43 : vector<1x192xf32> to vector<32x192xf32>
    %45 = arith.addf %42, %44 : vector<32x192xf32>
    %cst_40 = arith.constant 0.000000e+00 : f32
    %46 = vector.broadcast %cst_40 : f32 to vector<32x192xf32>
    %47 = arith.maximumf %45, %46 : vector<32x192xf32>
    %48 = arith.truncf %47 : vector<32x192xf32> to vector<32x192xbf16>
    %c0_41 = arith.constant 0 : index
    %c0_42 = arith.constant 0 : index
    %49 = vector.load %arg7[%c0_41, %c0_42] : memref<192x64xbf16, #tpu.memory_space<vmem>>, vector<192x64xbf16>
    %cst_43 = arith.constant dense<0.000000e+00> : vector<32x64xf32>
    %50 = tpu.matmul %48, %49, %cst_43 {dimension_numbers = #tpu.dot_dimension_numbers<[1], [0], [0], [1], [0, 0, 1, 1], [], []>} : vector<32x192xbf16>, vector<192x64xbf16>, vector<32x64xf32> -> vector<32x64xf32>
    %c0_44 = arith.constant 0 : index
    %c0_45 = arith.constant 0 : index
    %51 = vector.load %arg8[%c0_44, %c0_45] : memref<1x64xf32, #tpu.memory_space<vmem>>, vector<1x64xf32>
    %52 = vector.broadcast %51 : vector<1x64xf32> to vector<32x64xf32>
    %53 = arith.addf %50, %52 : vector<32x64xf32>
    %cst_46 = arith.constant 0.000000e+00 : f32
    %54 = vector.broadcast %cst_46 : f32 to vector<32x64xf32>
    %55 = arith.maximumf %53, %54 : vector<32x64xf32>
    %56 = arith.truncf %55 : vector<32x64xf32> to vector<32x64xbf16>
    %57 = vector.extract_strided_slice %56 {offsets = [0, 0], sizes = [16, 64], strides = [1, 1]} : vector<32x64xbf16> to vector<16x64xbf16>
    %c0_47 = arith.constant 0 : index
    %c0_48 = arith.constant 0 : index
    %58 = vector.load %arg19[%c0_47, %c0_48] : memref<32x128xbf16, #tpu.memory_space<vmem>>, vector<16x64xbf16>
    tpu.vector_store %arg19[%c0_47, %c0_48], %57 {strides = array<i32>} : memref<32x128xbf16, #tpu.memory_space<vmem>>, vector<16x64xbf16>,
    %59 = vector.extract_strided_slice %56 {offsets = [16, 0], sizes = [16, 64], strides = [1, 1]} : vector<32x64xbf16> to vector<16x64xbf16>
    %c0_49 = arith.constant 0 : index
    %c64_50 = arith.constant 64 : index
    %60 = vector.load %arg19[%c0_49, %c64_50] : memref<32x128xbf16, #tpu.memory_space<vmem>>, vector<16x64xbf16>
    tpu.vector_store %arg19[%c0_49, %c64_50], %59 {strides = array<i32>} : memref<32x128xbf16, #tpu.memory_space<vmem>>, vector<16x64xbf16>,
    %c0_51 = arith.constant 0 : index
    %c0_52 = arith.constant 0 : index
    %61 = vector.load %arg19[%c0_51, %c0_52] : memref<32x128xbf16, #tpu.memory_space<vmem>>, vector<16x128xbf16>
    %c0_53 = arith.constant 0 : index
    %c0_54 = arith.constant 0 : index
    %62 = vector.load %arg2[%c0_53, %c0_54] : memref<16x7xbf16, #tpu.memory_space<vmem>>, vector<16x7xbf16>
    %c0_55 = arith.constant 0 : index
    %c0_56 = arith.constant 0 : index
    %63 = vector.load %arg9[%c0_55, %c0_56] : memref<7x128xbf16, #tpu.memory_space<vmem>>, vector<7x128xbf16>
    %cst_57 = arith.constant dense<0.000000e+00> : vector<16x128xf32>
    %64 = tpu.matmul %62, %63, %cst_57 {dimension_numbers = #tpu.dot_dimension_numbers<[1], [0], [0], [1], [0, 0, 1, 1], [], []>} : vector<16x7xbf16>, vector<7x128xbf16>, vector<16x128xf32> -> vector<16x128xf32>
    %c0_58 = arith.constant 0 : index
    %c0_59 = arith.constant 0 : index
    %65 = vector.load %arg10[%c0_58, %c0_59] : memref<1x128xf32, #tpu.memory_space<vmem>>, vector<1x128xf32>
    %66 = vector.broadcast %65 : vector<1x128xf32> to vector<16x128xf32>
    %67 = arith.addf %64, %66 : vector<16x128xf32>
    %cst_60 = arith.constant 0.000000e+00 : f32
    %68 = vector.broadcast %cst_60 : f32 to vector<16x128xf32>
    %69 = arith.maximumf %67, %68 : vector<16x128xf32>
    %70 = arith.truncf %69 : vector<16x128xf32> to vector<16x128xbf16>
    %c0_61 = arith.constant 0 : index
    %c0_62 = arith.constant 0 : index
    %71 = vector.load %arg11[%c0_61, %c0_62] : memref<128x64xbf16, #tpu.memory_space<vmem>>, vector<128x64xbf16>
    %cst_63 = arith.constant dense<0.000000e+00> : vector<16x64xf32>
    %72 = tpu.matmul %70, %71, %cst_63 {dimension_numbers = #tpu.dot_dimension_numbers<[1], [0], [0], [1], [0, 0, 1, 1], [], []>} : vector<16x128xbf16>, vector<128x64xbf16>, vector<16x64xf32> -> vector<16x64xf32>
    %c0_64 = arith.constant 0 : index
    %c0_65 = arith.constant 0 : index
    %73 = vector.load %arg12[%c0_64, %c0_65] : memref<1x64xf32, #tpu.memory_space<vmem>>, vector<1x64xf32>
    %74 = vector.broadcast %73 : vector<1x64xf32> to vector<16x64xf32>
    %75 = arith.addf %72, %74 : vector<16x64xf32>
    %cst_66 = arith.constant 0.000000e+00 : f32
    %76 = vector.broadcast %cst_66 : f32 to vector<16x64xf32>
    %77 = arith.maximumf %75, %76 : vector<16x64xf32>
    %78 = arith.truncf %77 : vector<16x64xf32> to vector<16x64xbf16>
    %c0_67 = arith.constant 0 : index
    %c0_68 = arith.constant 0 : index
    %79 = vector.load %arg13[%c0_67, %c0_68] : memref<192x128xbf16, #tpu.memory_space<vmem>>, vector<64x128xbf16>
    %cst_69 = arith.constant dense<0.000000e+00> : vector<16x128xf32>
    %80 = tpu.matmul %78, %79, %cst_69 {dimension_numbers = #tpu.dot_dimension_numbers<[1], [0], [0], [1], [0, 0, 1, 1], [], []>} : vector<16x64xbf16>, vector<64x128xbf16>, vector<16x128xf32> -> vector<16x128xf32>
    %c64_70 = arith.constant 64 : index
    %c0_71 = arith.constant 0 : index
    %81 = vector.load %arg13[%c64_70, %c0_71] : memref<192x128xbf16, #tpu.memory_space<vmem>>, vector<128x128xbf16>
    %cst_72 = arith.constant dense<0.000000e+00> : vector<16x128xf32>
    %82 = tpu.matmul %61, %81, %cst_72 {dimension_numbers = #tpu.dot_dimension_numbers<[1], [0], [0], [1], [0, 0, 1, 1], [], []>} : vector<16x128xbf16>, vector<128x128xbf16>, vector<16x128xf32> -> vector<16x128xf32>
    %83 = arith.addf %80, %82 : vector<16x128xf32>
    %c0_73 = arith.constant 0 : index
    %c0_74 = arith.constant 0 : index
    %84 = vector.load %arg14[%c0_73, %c0_74] : memref<1x128xf32, #tpu.memory_space<vmem>>, vector<1x128xf32>
    %85 = vector.broadcast %84 : vector<1x128xf32> to vector<16x128xf32>
    %86 = arith.addf %83, %85 : vector<16x128xf32>
    %cst_75 = arith.constant 0.000000e+00 : f32
    %87 = vector.broadcast %cst_75 : f32 to vector<16x128xf32>
    %88 = arith.maximumf %86, %87 : vector<16x128xf32>
    %89 = arith.truncf %88 : vector<16x128xf32> to vector<16x128xbf16>
    %c0_76 = arith.constant 0 : index
    %c0_77 = arith.constant 0 : index
    %90 = vector.load %arg15[%c0_76, %c0_77] : memref<128x128xbf16, #tpu.memory_space<vmem>>, vector<128x128xbf16>
    %cst_78 = arith.constant dense<0.000000e+00> : vector<16x128xf32>
    %91 = tpu.matmul %89, %90, %cst_78 {dimension_numbers = #tpu.dot_dimension_numbers<[1], [0], [0], [1], [0, 0, 1, 1], [], []>} : vector<16x128xbf16>, vector<128x128xbf16>, vector<16x128xf32> -> vector<16x128xf32>
    %c0_79 = arith.constant 0 : index
    %c0_80 = arith.constant 0 : index
    %92 = vector.load %arg16[%c0_79, %c0_80] : memref<1x128xf32, #tpu.memory_space<vmem>>, vector<1x128xf32>
    %93 = vector.broadcast %92 : vector<1x128xf32> to vector<16x128xf32>
    %94 = arith.addf %91, %93 : vector<16x128xf32>
    %c0_81 = arith.constant 0 : index
    %c0_82 = arith.constant 0 : index
    %95 = vector.load %arg17[%c0_81, %c0_82] : memref<16x128xf32, #tpu.memory_space<vmem>>, vector<16x128xf32>
    tpu.vector_store %arg17[%c0_81, %c0_82], %94 {strides = array<i32>} : memref<16x128xf32, #tpu.memory_space<vmem>>, vector<16x128xf32>,
    return
  }
  func.func @transform_0(%arg0: i32) -> (i32, i32, i32) {
    %c0_i32 = arith.constant 0 : i32
    %c0_i32_0 = arith.constant 0 : i32
    %c0_i32_1 = arith.constant 0 : i32
    return %c0_i32, %arg0, %c0_i32_0 : i32, i32, i32
  }
  func.func @transform_1(%arg0: i32) -> (i32, i32) {
    %c0_i32 = arith.constant 0 : i32
    %c0_i32_0 = arith.constant 0 : i32
    return %arg0, %c0_i32 : i32, i32
  }
  func.func @transform_2(%arg0: i32) -> (i32, i32) {
    %c0_i32 = arith.constant 0 : i32
    %c0_i32_0 = arith.constant 0 : i32
    %c0_i32_1 = arith.constant 0 : i32
    return %c0_i32, %c0_i32_0 : i32, i32
  }
  func.func @transform_3(%arg0: i32) -> (i32, i32) {
    %c0_i32 = arith.constant 0 : i32
    %c0_i32_0 = arith.constant 0 : i32
    %c0_i32_1 = arith.constant 0 : i32
    return %c0_i32, %c0_i32_0 : i32, i32
  }
  func.func @transform_4(%arg0: i32) -> (i32, i32) {
    %c0_i32 = arith.constant 0 : i32
    %c0_i32_0 = arith.constant 0 : i32
    %c0_i32_1 = arith.constant 0 : i32
    return %c0_i32, %c0_i32_0 : i32, i32
  }
  func.func @transform_5(%arg0: i32) -> (i32, i32) {
    %c0_i32 = arith.constant 0 : i32
    %c0_i32_0 = arith.constant 0 : i32
    %c0_i32_1 = arith.constant 0 : i32
    return %c0_i32, %c0_i32_0 : i32, i32
  }
  func.func @transform_6(%arg0: i32) -> (i32, i32) {
    %c0_i32 = arith.constant 0 : i32
    %c0_i32_0 = arith.constant 0 : i32
    %c0_i32_1 = arith.constant 0 : i32
    return %c0_i32, %c0_i32_0 : i32, i32
  }
  func.func @transform_7(%arg0: i32) -> (i32, i32) {
    %c0_i32 = arith.constant 0 : i32
    %c0_i32_0 = arith.constant 0 : i32
    %c0_i32_1 = arith.constant 0 : i32
    return %c0_i32, %c0_i32_0 : i32, i32
  }
  func.func @transform_8(%arg0: i32) -> (i32, i32) {
    %c0_i32 = arith.constant 0 : i32
    %c0_i32_0 = arith.constant 0 : i32
    %c0_i32_1 = arith.constant 0 : i32
    return %c0_i32, %c0_i32_0 : i32, i32
  }
  func.func @transform_9(%arg0: i32) -> (i32, i32) {
    %c0_i32 = arith.constant 0 : i32
    %c0_i32_0 = arith.constant 0 : i32
    %c0_i32_1 = arith.constant 0 : i32
    return %c0_i32, %c0_i32_0 : i32, i32
  }
  func.func @transform_10(%arg0: i32) -> (i32, i32) {
    %c0_i32 = arith.constant 0 : i32
    %c0_i32_0 = arith.constant 0 : i32
    %c0_i32_1 = arith.constant 0 : i32
    return %c0_i32, %c0_i32_0 : i32, i32
  }
  func.func @transform_11(%arg0: i32) -> (i32, i32) {
    %c0_i32 = arith.constant 0 : i32
    %c0_i32_0 = arith.constant 0 : i32
    %c0_i32_1 = arith.constant 0 : i32
    return %c0_i32, %c0_i32_0 : i32, i32
  }
  func.func @transform_12(%arg0: i32) -> (i32, i32) {
    %c0_i32 = arith.constant 0 : i32
    %c0_i32_0 = arith.constant 0 : i32
    %c0_i32_1 = arith.constant 0 : i32
    return %c0_i32, %c0_i32_0 : i32, i32
  }
  func.func @transform_13(%arg0: i32) -> (i32, i32) {
    %c0_i32 = arith.constant 0 : i32
    %c0_i32_0 = arith.constant 0 : i32
    %c0_i32_1 = arith.constant 0 : i32
    return %c0_i32, %c0_i32_0 : i32, i32
  }
  func.func @transform_14(%arg0: i32) -> (i32, i32) {
    %c0_i32 = arith.constant 0 : i32
    %c0_i32_0 = arith.constant 0 : i32
    %c0_i32_1 = arith.constant 0 : i32
    return %c0_i32, %c0_i32_0 : i32, i32
  }
  func.func @transform_15(%arg0: i32) -> (i32, i32) {
    %c0_i32 = arith.constant 0 : i32
    %c0_i32_0 = arith.constant 0 : i32
    %c0_i32_1 = arith.constant 0 : i32
    return %c0_i32, %c0_i32_0 : i32, i32
  }
  func.func @transform_16(%arg0: i32) -> (i32, i32) {
    %c0_i32 = arith.constant 0 : i32
    %c0_i32_0 = arith.constant 0 : i32
    return %arg0, %c0_i32 : i32, i32
  }
}

</mosaic_0001>

<llo_original>
// kernel: recursive_layer_forward.1
$region0: #{recursive_layer_forward.1}
  #allocation0 [shape = 'u32[]', space=smem, size = 0x4, offset = 0x4, fixed_abs, tag = 'smem constant byte address 0x4 - core index']
  #allocation1 [shape = 'u32[144,128]{1,0:T(1,128)}', space=vmem, size = 0x12000, scoped, tag = 'internal scratch']
  #allocation2 [shape = 'bf16[96,64]{1,0:T(16,128)(2,1)}', space=vmem, size = 0x6000, scoped, tag = 'scratch operand']
  #allocation3 [shape = 'bf16[32,128]{1,0:T(16,128)(2,1)}', space=vmem, size = 0x2000, scoped, tag = 'scratch operand']
  %s0 = inlined_call_operand.vmem [shape: bf16[6,32,14], index: 0, kind: input, shape index: {}]
  %s1 = inlined_call_operand.vmem [shape: bf16[32,7], index: 1, kind: input, shape index: {}]
  %s2 = inlined_call_operand.vmem [shape: bf16[14,64], index: 2, kind: input, shape index: {}]
  %s3 = inlined_call_operand.vmem [shape: f32[1,64], index: 3, kind: input, shape index: {}]
  %s4 = inlined_call_operand.vmem [shape: bf16[192,192], index: 4, kind: input, shape index: {}]
  %s5 = inlined_call_operand.vmem [shape: f32[1,192], index: 5, kind: input, shape index: {}]
  %s6 = inlined_call_operand.vmem [shape: bf16[192,64], index: 6, kind: input, shape index: {}]
  %s7 = inlined_call_operand.vmem [shape: f32[1,64], index: 7, kind: input, shape index: {}]
  %s8 = inlined_call_operand.vmem [shape: bf16[7,128], index: 8, kind: input, shape index: {}]
  %s9 = inlined_call_operand.vmem [shape: f32[1,128], index: 9, kind: input, shape index: {}]
  %s10 = inlined_call_operand.vmem [shape: bf16[128,64], index: 10, kind: input, shape index: {}]
  %s11 = inlined_call_operand.vmem [shape: f32[1,64], index: 11, kind: input, shape index: {}]
  %s12 = inlined_call_operand.vmem [shape: bf16[192,128], index: 12, kind: input, shape index: {}]
  %s13 = inlined_call_operand.vmem [shape: f32[1,128], index: 13, kind: input, shape index: {}]
  %s14 = inlined_call_operand.vmem [shape: bf16[128,128], index: 14, kind: input, shape index: {}]
  %s15 = inlined_call_operand.vmem [shape: f32[1,128], index: 15, kind: input, shape index: {}]
  %s16 = inlined_call_operand.vmem [shape: f32[32,128], index: 16, kind: output, shape index: {}]
  %s17 = sld [smem:[#allocation0]]
  $region138: #{recursive_layer_forward.1} parent=0
    _
  %s19 = ssub.s32 1, %s17
  %s20 = scalar_select 0, %s19, %s17
  $region1: #{recursive_layer_forward.1} parent=0
    #allocation4 [shape = 'u8[49152]{0}', space=vmem, size = 0xc000, scoped, tag = 'input window, operand 0']
    loop: start=0, step=1, limit=4
    $region2: #{recursive_layer_forward.1} parent=1 // loop_pre_header
      _
    $region3: #{recursive_layer_forward.1} parent=1 // loop_header
      %s22 = sphi 0, %s26
      %p23 = scmp.ge.s32.totalorder %s22, 4
      %s32 = sphi 0, %s34
      %s35 = sphi 0, %s32
      %s36 = sphi 0, %s35
      %s52 = sphi 0, %s36
      %s58 = sphi 0, %s60
      %s61 = sphi 0, %s58
      %s62 = sphi 0, %s61
      %s78 = sphi 0, %s62
      %s82 = sphi 0, %s82
      %s84 = sphi 0, %s82
      %s85 = sphi 0, %s84
      %s99 = sphi 0, %s85
      %s103 = sphi 0, %s103
      %s105 = sphi 0, %s103
      %s106 = sphi 0, %s105
      %s120 = sphi 0, %s106
      %s124 = sphi 0, %s124
      %s126 = sphi 0, %s124
      %s127 = sphi 0, %s126
      %s141 = sphi 0, %s127
      %s145 = sphi 0, %s145
      %s147 = sphi 0, %s145
      %s148 = sphi 0, %s147
      %s162 = sphi 0, %s148
      %s166 = sphi 0, %s166
      %s168 = sphi 0, %s166
      %s169 = sphi 0, %s168
      %s183 = sphi 0, %s169
      %s187 = sphi 0, %s187
      %s189 = sphi 0, %s187
      %s190 = sphi 0, %s189
      %s204 = sphi 0, %s190
      %s208 = sphi 0, %s208
      %s210 = sphi 0, %s208
      %s211 = sphi 0, %s210
      %s225 = sphi 0, %s211
      %s229 = sphi 0, %s229
      %s231 = sphi 0, %s229
      %s232 = sphi 0, %s231
      %s246 = sphi 0, %s232
      %s250 = sphi 0, %s250
      %s252 = sphi 0, %s250
      %s253 = sphi 0, %s252
      %s267 = sphi 0, %s253
      %s271 = sphi 0, %s271
      %s273 = sphi 0, %s271
      %s274 = sphi 0, %s273
      %s288 = sphi 0, %s274
      %s292 = sphi 0, %s292
      %s294 = sphi 0, %s292
      %s295 = sphi 0, %s294
      %s309 = sphi 0, %s295
      %s313 = sphi 0, %s313
      %s315 = sphi 0, %s313
      %s316 = sphi 0, %s315
      %s330 = sphi 0, %s316
      %s334 = sphi 0, %s334
      %s336 = sphi 0, %s334
      %s337 = sphi 0, %s336
      %s351 = sphi 0, %s337
      %s355 = sphi 0, %s355
      %s357 = sphi 0, %s355
      %s358 = sphi 0, %s357
      %s372 = sphi 0, %s358
      %s378 = sphi 0, %s380
      %s381 = sphi 0, %s378
      %s382 = sphi 0, %s381
      %s398 = sphi 0, %s382
    $region4: #{recursive_layer_forward.1} parent=1 // loop_header_branch
      %25 = sbr.rel (%p23) target = $region8
    $region5: #{recursive_layer_forward.1} parent=1 // loop_body
      %s27 = ssub.s32 %s22, 1
      %s28 = ssub.s32 %s22, 2
      %s29 = sadd.s32 %s22, 1
      %s30 = ssub.s32 %s22, %s29
      %p31 = scmp.eq.s32.totalorder %s30, 0
      %s33 = sadd.s32 %s32, 1
      %s34 = scalar_select %p31, %s32, %s33
      %p37 = pneg %p31
      %p38 = scmp.eq.s32.totalorder %s22, 1
      %p39 = por %p37, %p38
      %p40 = scmp.ne.s32.totalorder %s32, %s35
      %p41 = scmp.eq.s32.totalorder %s22, 0
      %p42 = por %p40, %p41
      %p43 = scmp.ne.s32.totalorder %s32, %s35
      %p44 = scmp.eq.s32.totalorder %s27, 1
      %p45 = por %p43, %p44
      %p46 = scmp.ne.s32.totalorder %s35, %s36
      %p47 = scmp.eq.s32.totalorder %s27, 0
      %p48 = por %p46, %p47
      %p49 = scmp.ne.s32.totalorder %s35, %s36
      %p50 = scmp.eq.s32.totalorder %s28, 1
      %p51 = por %p49, %p50
      %p53 = scmp.ne.s32.totalorder %s36, %s52
      %p54 = scmp.eq.s32.totalorder %s28, 0
      %p55 = por %p53, %p54
      %s56 = ssub.s32 %s22, %s29
      %p57 = scmp.eq.s32.totalorder %s56, 0
      %s59 = sadd.s32 %s58, 1
      %s60 = scalar_select %p57, %s58, %s59
      %p63 = pneg %p57
      %p64 = scmp.eq.s32.totalorder %s22, 1
      %p65 = por %p63, %p64
      %p66 = scmp.ne.s32.totalorder %s58, %s61
      %p67 = scmp.eq.s32.totalorder %s22, 0
      %p68 = por %p66, %p67
      %p69 = scmp.ne.s32.totalorder %s58, %s61
      %p70 = scmp.eq.s32.totalorder %s27, 1
      %p71 = por %p69, %p70
      %p72 = scmp.ne.s32.totalorder %s61, %s62
      %p73 = scmp.eq.s32.totalorder %s27, 0
      %p74 = por %p72, %p73
      %p75 = scmp.ne.s32.totalorder %s61, %s62
      %p76 = scmp.eq.s32.totalorder %s28, 1
      %p77 = por %p75, %p76
      %p79 = scmp.ne.s32.totalorder %s62, %s78
      %p80 = scmp.eq.s32.totalorder %s28, 0
      %p81 = por %p79, %p80
      %s83 = sadd.s32 %s82, 1
      %p86 = scmp.eq.s32.totalorder %s22, 1
      %p87 = scmp.ne.s32.totalorder %s82, %s84
      %p88 = scmp.eq.s32.totalorder %s22, 0
      %p89 = por %p87, %p88
      %p90 = scmp.ne.s32.totalorder %s82, %s84
      %p91 = scmp.eq.s32.totalorder %s27, 1
      %p92 = por %p90, %p91
      %p93 = scmp.ne.s32.totalorder %s84, %s85
      %p94 = scmp.eq.s32.totalorder %s27, 0
      %p95 = por %p93, %p94
      %p96 = scmp.ne.s32.totalorder %s84, %s85
      %p97 = scmp.eq.s32.totalorder %s28, 1
      %p98 = por %p96, %p97
      %p100 = scmp.ne.s32.totalorder %s85, %s99
      %p101 = scmp.eq.s32.totalorder %s28, 0
      %p102 = por %p100, %p101
      %s104 = sadd.s32 %s103, 1
      %p107 = scmp.eq.s32.totalorder %s22, 1
      %p108 = scmp.ne.s32.totalorder %s103, %s105
      %p109 = scmp.eq.s32.totalorder %s22, 0
      %p110 = por %p108, %p109
      %p111 = scmp.ne.s32.totalorder %s103, %s105
      %p112 = scmp.eq.s32.totalorder %s27, 1
      %p113 = por %p111, %p112
      %p114 = scmp.ne.s32.totalorder %s105, %s106
      %p115 = scmp.eq.s32.totalorder %s27, 0
      %p116 = por %p114, %p115
      %p117 = scmp.ne.s32.totalorder %s105, %s106
      %p118 = scmp.eq.s32.totalorder %s28, 1
      %p119 = por %p117, %p118
      %p121 = scmp.ne.s32.totalorder %s106, %s120
      %p122 = scmp.eq.s32.totalorder %s28, 0
      %p123 = por %p121, %p122
      %s125 = sadd.s32 %s124, 1
      %p128 = scmp.eq.s32.totalorder %s22, 1
      %p129 = scmp.ne.s32.totalorder %s124, %s126
      %p130 = scmp.eq.s32.totalorder %s22, 0
      %p131 = por %p129, %p130
      %p132 = scmp.ne.s32.totalorder %s124, %s126
      %p133 = scmp.eq.s32.totalorder %s27, 1
      %p134 = por %p132, %p133
      %p135 = scmp.ne.s32.totalorder %s126, %s127
      %p136 = scmp.eq.s32.totalorder %s27, 0
      %p137 = por %p135, %p136
      %p138 = scmp.ne.s32.totalorder %s126, %s127
      %p139 = scmp.eq.s32.totalorder %s28, 1
      %p140 = por %p138, %p139
      %p142 = scmp.ne.s32.totalorder %s127, %s141
      %p143 = scmp.eq.s32.totalorder %s28, 0
      %p144 = por %p142, %p143
      %s146 = sadd.s32 %s145, 1
      %p149 = scmp.eq.s32.totalorder %s22, 1
      %p150 = scmp.ne.s32.totalorder %s145, %s147
      %p151 = scmp.eq.s32.totalorder %s22, 0
      %p152 = por %p150, %p151
      %p153 = scmp.ne.s32.totalorder %s145, %s147
      %p154 = scmp.eq.s32.totalorder %s27, 1
      %p155 = por %p153, %p154
      %p156 = scmp.ne.s32.totalorder %s147, %s148
      %p157 = scmp.eq.s32.totalorder %s27, 0
      %p158 = por %p156, %p157
      %p159 = scmp.ne.s32.totalorder %s147, %s148
      %p160 = scmp.eq.s32.totalorder %s28, 1
      %p161 = por %p159, %p160
      %p163 = scmp.ne.s32.totalorder %s148, %s162
      %p164 = scmp.eq.s32.totalorder %s28, 0
      %p165 = por %p163, %p164
      %s167 = sadd.s32 %s166, 1
      %p170 = scmp.eq.s32.totalorder %s22, 1
      %p171 = scmp.ne.s32.totalorder %s166, %s168
      %p172 = scmp.eq.s32.totalorder %s22, 0
      %p173 = por %p171, %p172
      %p174 = scmp.ne.s32.totalorder %s166, %s168
      %p175 = scmp.eq.s32.totalorder %s27, 1
      %p176 = por %p174, %p175
      %p177 = scmp.ne.s32.totalorder %s168, %s169
      %p178 = scmp.eq.s32.totalorder %s27, 0
      %p179 = por %p177, %p178
      %p180 = scmp.ne.s32.totalorder %s168, %s169
      %p181 = scmp.eq.s32.totalorder %s28, 1
      %p182 = por %p180, %p181
      %p184 = scmp.ne.s32.totalorder %s169, %s183
      %p185 = scmp.eq.s32.totalorder %s28, 0
      %p186 = por %p184, %p185
      %s188 = sadd.s32 %s187, 1
      %p191 = scmp.eq.s32.totalorder %s22, 1
      %p192 = scmp.ne.s32.totalorder %s187, %s189
      %p193 = scmp.eq.s32.totalorder %s22, 0
      %p194 = por %p192, %p193
      %p195 = scmp.ne.s32.totalorder %s187, %s189
      %p196 = scmp.eq.s32.totalorder %s27, 1
      %p197 = por %p195, %p196
      %p198 = scmp.ne.s32.totalorder %s189, %s190
      %p199 = scmp.eq.s32.totalorder %s27, 0
      %p200 = por %p198, %p199
      %p201 = scmp.ne.s32.totalorder %s189, %s190
      %p202 = scmp.eq.s32.totalorder %s28, 1
      %p203 = por %p201, %p202
      %p205 = scmp.ne.s32.totalorder %s190, %s204
      %p206 = scmp.eq.s32.totalorder %s28, 0
      %p207 = por %p205, %p206
      %s209 = sadd.s32 %s208, 1
      %p212 = scmp.eq.s32.totalorder %s22, 1
      %p213 = scmp.ne.s32.totalorder %s208, %s210
      %p214 = scmp.eq.s32.totalorder %s22, 0
      %p215 = por %p213, %p214
      %p216 = scmp.ne.s32.totalorder %s208, %s210
      %p217 = scmp.eq.s32.totalorder %s27, 1
      %p218 = por %p216, %p217
      %p219 = scmp.ne.s32.totalorder %s210, %s211
      %p220 = scmp.eq.s32.totalorder %s27, 0
      %p221 = por %p219, %p220
      %p222 = scmp.ne.s32.totalorder %s210, %s211
      %p223 = scmp.eq.s32.totalorder %s28, 1
      %p224 = por %p222, %p223
      %p226 = scmp.ne.s32.totalorder %s211, %s225
      %p227 = scmp.eq.s32.totalorder %s28, 0
      %p228 = por %p226, %p227
      %s230 = sadd.s32 %s229, 1
      %p233 = scmp.eq.s32.totalorder %s22, 1
      %p234 = scmp.ne.s32.totalorder %s229, %s231
      %p235 = scmp.eq.s32.totalorder %s22, 0
      %p236 = por %p234, %p235
      %p237 = scmp.ne.s32.totalorder %s229, %s231
      %p238 = scmp.eq.s32.totalorder %s27, 1
      %p239 = por %p237, %p238
      %p240 = scmp.ne.s32.totalorder %s231, %s232
      %p241 = scmp.eq.s32.totalorder %s27, 0
      %p242 = por %p240, %p241
      %p243 = scmp.ne.s32.totalorder %s231, %s232
      %p244 = scmp.eq.s32.totalorder %s28, 1
      %p245 = por %p243, %p244
      %p247 = scmp.ne.s32.totalorder %s232, %s246
      %p248 = scmp.eq.s32.totalorder %s28, 0
      %p249 = por %p247, %p248
      %s251 = sadd.s32 %s250, 1
      %p254 = scmp.eq.s32.totalorder %s22, 1
      %p255 = scmp.ne.s32.totalorder %s250, %s252
      %p256 = scmp.eq.s32.totalorder %s22, 0
      %p257 = por %p255, %p256
      %p258 = scmp.ne.s32.totalorder %s250, %s252
      %p259 = scmp.eq.s32.totalorder %s27, 1
      %p260 = por %p258, %p259
      %p261 = scmp.ne.s32.totalorder %s252, %s253
      %p262 = scmp.eq.s32.totalorder %s27, 0
      %p263 = por %p261, %p262
      %p264 = scmp.ne.s32.totalorder %s252, %s253
      %p265 = scmp.eq.s32.totalorder %s28, 1
      %p266 = por %p264, %p265
      %p268 = scmp.ne.s32.totalorder %s253, %s267
      %p269 = scmp.eq.s32.totalorder %s28, 0
      %p270 = por %p268, %p269
      %s272 = sadd.s32 %s271, 1
      %p275 = scmp.eq.s32.totalorder %s22, 1
      %p276 = scmp.ne.s32.totalorder %s271, %s273
      %p277 = scmp.eq.s32.totalorder %s22, 0
      %p278 = por %p276, %p277
      %p279 = scmp.ne.s32.totalorder %s271, %s273
      %p280 = scmp.eq.s32.totalorder %s27, 1
      %p281 = por %p279, %p280
      %p282 = scmp.ne.s32.totalorder %s273, %s274
      %p283 = scmp.eq.s32.totalorder %s27, 0
      %p284 = por %p282, %p283
      %p285 = scmp.ne.s32.totalorder %s273, %s274
      %p286 = scmp.eq.s32.totalorder %s28, 1
      %p287 = por %p285, %p286
      %p289 = scmp.ne.s32.totalorder %s274, %s288
      %p290 = scmp.eq.s32.totalorder %s28, 0
      %p291 = por %p289, %p290
      %s293 = sadd.s32 %s292, 1
      %p296 = scmp.eq.s32.totalorder %s22, 1
      %p297 = scmp.ne.s32.totalorder %s292, %s294
      %p298 = scmp.eq.s32.totalorder %s22, 0
      %p299 = por %p297, %p298
      %p300 = scmp.ne.s32.totalorder %s292, %s294
      %p301 = scmp.eq.s32.totalorder %s27, 1
      %p302 = por %p300, %p301
      %p303 = scmp.ne.s32.totalorder %s294, %s295
      %p304 = scmp.eq.s32.totalorder %s27, 0
      %p305 = por %p303, %p304
      %p306 = scmp.ne.s32.totalorder %s294, %s295
      %p307 = scmp.eq.s32.totalorder %s28, 1
      %p308 = por %p306, %p307
      %p310 = scmp.ne.s32.totalorder %s295, %s309
      %p311 = scmp.eq.s32.totalorder %s28, 0
      %p312 = por %p310, %p311
      %s314 = sadd.s32 %s313, 1
      %p317 = scmp.eq.s32.totalorder %s22, 1
      %p318 = scmp.ne.s32.totalorder %s313, %s315
      %p319 = scmp.eq.s32.totalorder %s22, 0
      %p320 = por %p318, %p319
      %p321 = scmp.ne.s32.totalorder %s313, %s315
      %p322 = scmp.eq.s32.totalorder %s27, 1
      %p323 = por %p321, %p322
      %p324 = scmp.ne.s32.totalorder %s315, %s316
      %p325 = scmp.eq.s32.totalorder %s27, 0
      %p326 = por %p324, %p325
      %p327 = scmp.ne.s32.totalorder %s315, %s316
      %p328 = scmp.eq.s32.totalorder %s28, 1
      %p329 = por %p327, %p328
      %p331 = scmp.ne.s32.totalorder %s316, %s330
      %p332 = scmp.eq.s32.totalorder %s28, 0
      %p333 = por %p331, %p332
      %s335 = sadd.s32 %s334, 1
      %p338 = scmp.eq.s32.totalorder %s22, 1
      %p339 = scmp.ne.s32.totalorder %s334, %s336
      %p340 = scmp.eq.s32.totalorder %s22, 0
      %p341 = por %p339, %p340
      %p342 = scmp.ne.s32.totalorder %s334, %s336
      %p343 = scmp.eq.s32.totalorder %s27, 1
      %p344 = por %p342, %p343
      %p345 = scmp.ne.s32.totalorder %s336, %s337
      %p346 = scmp.eq.s32.totalorder %s27, 0
      %p347 = por %p345, %p346
      %p348 = scmp.ne.s32.totalorder %s336, %s337
      %p349 = scmp.eq.s32.totalorder %s28, 1
      %p350 = por %p348, %p349
      %p352 = scmp.ne.s32.totalorder %s337, %s351
      %p353 = scmp.eq.s32.totalorder %s28, 0
      %p354 = por %p352, %p353
      %s356 = sadd.s32 %s355, 1
      %p359 = scmp.eq.s32.totalorder %s22, 1
      %p360 = scmp.ne.s32.totalorder %s355, %s357
      %p361 = scmp.eq.s32.totalorder %s22, 0
      %p362 = por %p360, %p361
      %p363 = scmp.ne.s32.totalorder %s355, %s357
      %p364 = scmp.eq.s32.totalorder %s27, 1
      %p365 = por %p363, %p364
      %p366 = scmp.ne.s32.totalorder %s357, %s358
      %p367 = scmp.eq.s32.totalorder %s27, 0
      %p368 = por %p366, %p367
      %p369 = scmp.ne.s32.totalorder %s357, %s358
      %p370 = scmp.eq.s32.totalorder %s28, 1
      %p371 = por %p369, %p370
      %p373 = scmp.ne.s32.totalorder %s358, %s372
      %p374 = scmp.eq.s32.totalorder %s28, 0
      %p375 = por %p373, %p374
      %s376 = ssub.s32 %s22, %s29
      %p377 = scmp.eq.s32.totalorder %s376, 0
      %s379 = sadd.s32 %s378, 1
      %s380 = scalar_select %p377, %s378, %s379
      %p383 = pneg %p377
      %p384 = scmp.eq.s32.totalorder %s22, 1
      %p385 = por %p383, %p384
      %p386 = scmp.ne.s32.totalorder %s378, %s381
      %p387 = scmp.eq.s32.totalorder %s22, 0
      %p388 = por %p386, %p387
      %p389 = scmp.ne.s32.totalorder %s378, %s381
      %p390 = scmp.eq.s32.totalorder %s27, 1
      %p391 = por %p389, %p390
      %p392 = scmp.ne.s32.totalorder %s381, %s382
      %p393 = scmp.eq.s32.totalorder %s27, 0
      %p394 = por %p392, %p393
      %p395 = scmp.ne.s32.totalorder %s381, %s382
      %p396 = scmp.eq.s32.totalorder %s28, 1
      %p397 = por %p395, %p396
      %p399 = scmp.ne.s32.totalorder %s382, %s398
      %p400 = scmp.eq.s32.totalorder %s28, 0
      %p401 = por %p399, %p400
      %p402 = scmp.le.s32.totalorder 1, %s22
      %p403 = scmp.lt.s32.totalorder %s22, 3
      %p404 = pnand %p402, %p403
      %p405 = pneg %p404
      // Predicated region
      $region9: #{recursive_layer_forward.1} parent=5 // pred_check
        _
      $region10: #{recursive_layer_forward.1} parent=5 // pred_check_branch
        %407 = sbr.rel (%p404) target = $region12
      $region11: #{recursive_layer_forward.1} parent=5 // pred_region
        %s408 = ssub.s32 %s22, 1
        // Predicated region
        $region13: #{recursive_layer_forward.1} parent=11 // pred_check
          %p409 = pneg %p95
        $region14: #{recursive_layer_forward.1} parent=11 // pred_check_branch
          %411 = sbr.rel (%p409) target = $region16
        $region15: #{recursive_layer_forward.1} parent=11 // pred_region
          _
        $region16: #{recursive_layer_forward.1} parent=11 // pred_fallthru
          _
        // Predicated region
        $region17: #{recursive_layer_forward.1} parent=11 // pred_check
          %p412 = pneg %p116
        $region18: #{recursive_layer_forward.1} parent=11 // pred_check_branch
          %414 = sbr.rel (%p412) target = $region20
        $region19: #{recursive_layer_forward.1} parent=11 // pred_region
          _
        $region20: #{recursive_layer_forward.1} parent=11 // pred_fallthru
          _
        // Predicated region
        $region21: #{recursive_layer_forward.1} parent=11 // pred_check
          %p415 = pneg %p137
        $region22: #{recursive_layer_forward.1} parent=11 // pred_check_branch
          %417 = sbr.rel (%p415) target = $region24
        $region23: #{recursive_layer_forward.1} parent=11 // pred_region
          _
        $region24: #{recursive_layer_forward.1} parent=11 // pred_fallthru
          _
        // Predicated region
        $region25: #{recursive_layer_forward.1} parent=11 // pred_check
          %p418 = pneg %p158
        $region26: #{recursive_layer_forward.1} parent=11 // pred_check_branch
          %420 = sbr.rel (%p418) target = $region28
        $region27: #{recursive_layer_forward.1} parent=11 // pred_region
          _
        $region28: #{recursive_layer_forward.1} parent=11 // pred_fallthru
          _
        // Predicated region
        $region29: #{recursive_layer_forward.1} parent=11 // pred_check
          %p421 = pneg %p179
        $region30: #{recursive_layer_forward.1} parent=11 // pred_check_branch
          %423 = sbr.rel (%p421) target = $region32
        $region31: #{recursive_layer_forward.1} parent=11 // pred_region
          _
        $region32: #{recursive_layer_forward.1} parent=11 // pred_fallthru
          _
        // Predicated region
        $region33: #{recursive_layer_forward.1} parent=11 // pred_check
          %p424 = pneg %p200
        $region34: #{recursive_layer_forward.1} parent=11 // pred_check_branch
          %426 = sbr.rel (%p424) target = $region36
        $region35: #{recursive_layer_forward.1} parent=11 // pred_region
          _
        $region36: #{recursive_layer_forward.1} parent=11 // pred_fallthru
          _
        // Predicated region
        $region37: #{recursive_layer_forward.1} parent=11 // pred_check
          %p427 = pneg %p221
        $region38: #{recursive_layer_forward.1} parent=11 // pred_check_branch
          %429 = sbr.rel (%p427) target = $region40
        $region39: #{recursive_layer_forward.1} parent=11 // pred_region
          _
        $region40: #{recursive_layer_forward.1} parent=11 // pred_fallthru
          _
        // Predicated region
        $region41: #{recursive_layer_forward.1} parent=11 // pred_check
          %p430 = pneg %p242
        $region42: #{recursive_layer_forward.1} parent=11 // pred_check_branch
          %432 = sbr.rel (%p430) target = $region44
        $region43: #{recursive_layer_forward.1} parent=11 // pred_region
          _
        $region44: #{recursive_layer_forward.1} parent=11 // pred_fallthru
          _
        // Predicated region
        $region45: #{recursive_layer_forward.1} parent=11 // pred_check
          %p433 = pneg %p263
        $region46: #{recursive_layer_forward.1} parent=11 // pred_check_branch
          %435 = sbr.rel (%p433) target = $region48
        $region47: #{recursive_layer_forward.1} parent=11 // pred_region
          _
        $region48: #{recursive_layer_forward.1} parent=11 // pred_fallthru
          _
        // Predicated region
        $region49: #{recursive_layer_forward.1} parent=11 // pred_check
          %p436 = pneg %p284
        $region50: #{recursive_layer_forward.1} parent=11 // pred_check_branch
          %438 = sbr.rel (%p436) target = $region52
        $region51: #{recursive_layer_forward.1} parent=11 // pred_region
          _
        $region52: #{recursive_layer_forward.1} parent=11 // pred_fallthru
          _
        // Predicated region
        $region53: #{recursive_layer_forward.1} parent=11 // pred_check
          %p439 = pneg %p305
        $region54: #{recursive_layer_forward.1} parent=11 // pred_check_branch
          %441 = sbr.rel (%p439) target = $region56
        $region55: #{recursive_layer_forward.1} parent=11 // pred_region
          _
        $region56: #{recursive_layer_forward.1} parent=11 // pred_fallthru
          _
        // Predicated region
        $region57: #{recursive_layer_forward.1} parent=11 // pred_check
          %p442 = pneg %p326
        $region58: #{recursive_layer_forward.1} parent=11 // pred_check_branch
          %444 = sbr.rel (%p442) target = $region60
        $region59: #{recursive_layer_forward.1} parent=11 // pred_region
          _
        $region60: #{recursive_layer_forward.1} parent=11 // pred_fallthru
          _
        // Predicated region
        $region61: #{recursive_layer_forward.1} parent=11 // pred_check
          %p445 = pneg %p347
        $region62: #{recursive_layer_forward.1} parent=11 // pred_check_branch
          %447 = sbr.rel (%p445) target = $region64
        $region63: #{recursive_layer_forward.1} parent=11 // pred_region
          _
        $region64: #{recursive_layer_forward.1} parent=11 // pred_fallthru
          _
        // Predicated region
        $region65: #{recursive_layer_forward.1} parent=11 // pred_check
          %p448 = pneg %p368
        $region66: #{recursive_layer_forward.1} parent=11 // pred_check_branch
          %450 = sbr.rel (%p448) target = $region68
        $region67: #{recursive_layer_forward.1} parent=11 // pred_region
          _
        $region68: #{recursive_layer_forward.1} parent=11 // pred_fallthru
          _
      $region12: #{recursive_layer_forward.1} parent=5 // pred_fallthru
        _
      %p451 = scmp.lt.s32.totalorder %s22, 2
      // Predicated region
      $region69: #{recursive_layer_forward.1} parent=5 // pred_check
        %p452 = pneg %p451
      $region70: #{recursive_layer_forward.1} parent=5 // pred_check_branch
        %454 = sbr.rel (%p452) target = $region72
      $region71: #{recursive_layer_forward.1} parent=5 // pred_region
        // Predicated region
        $region73: #{recursive_layer_forward.1} parent=71 // pred_check
          %p455 = pneg %p42
        $region74: #{recursive_layer_forward.1} parent=71 // pred_check_branch
          %457 = sbr.rel (%p455) target = $region76
        $region75: #{recursive_layer_forward.1} parent=71 // pred_region
          %s458 = sand.u32 %s32, 1
          %s459 = sand.u32 %s32, 1
          %s460 = smul.addr %s459, 48
          %s461 = scalar_lea.vmem [#allocation4], %s460
          %s462 = smul.u32 2, %s22
          %s463 = smul.addr %s462, 4
          %s464 = scalar_lea.vmem %s0, %s463
          // Predicated region
          $region77: #{recursive_layer_forward.1} parent=75 // pred_check
            _
          $region78: #{recursive_layer_forward.1} parent=75 // pred_check_branch
            %466 = sbr.rel (0) target = $region80
          $region79: #{recursive_layer_forward.1} parent=75 // pred_region
            // Predicated region
            $region81: #{recursive_layer_forward.1} parent=79 // pred_check
              _
            $region82: #{recursive_layer_forward.1} parent=79 // pred_check_branch
              %468 = sbr.rel target = $region84
            $region83: #{recursive_layer_forward.1} parent=79 // pred_region
              // Predicated region
              $region96: #{recursive_layer_forward.1} parent=83 // pred_check
                _
              $region97: #{recursive_layer_forward.1} parent=83 // pred_check_branch
                %505 = sbr.rel (0) target = $region99
              $region98: #{recursive_layer_forward.1} parent=83 // pred_region
                loop: start=0, step=1, limit=1
                $region100: #{recursive_layer_forward.1} parent=98 // loop_pre_header
                  _
                $region101: #{recursive_layer_forward.1} parent=98 // loop_header
                  %s507 = sphi 0, %s511
                  %p508 = scmp.ge.s32.totalorder %s507, 1
                  %s512 = sphi %s464, %s464
                  %s513 = sphi %s461, %s461
                $region102: #{recursive_layer_forward.1} parent=98 // loop_header_branch
                  %510 = sbr.rel (%p508) target = $region106
                $region103: #{recursive_layer_forward.1} parent=98 // loop_body
                  _
                $region104: #{recursive_layer_forward.1} parent=98 // loop_footer
                  %s511 = sadd.s32 1, %s507
                $region105: #{recursive_layer_forward.1} parent=98 // loop_footer_branch
                  %506 = sbr.rel target = $region101
                $region106: #{recursive_layer_forward.1} parent=98 // loop_exit
                  _
                loop: start=0, step=1, limit=1
                $region107: #{recursive_layer_forward.1} parent=98 // loop_pre_header
                  _
                $region108: #{recursive_layer_forward.1} parent=98 // loop_header
                  %s516 = sphi 0, %s520
                  %p517 = scmp.ge.s32.totalorder %s516, 1
                  %s521 = sphi %s464, %s464
                  %s522 = sphi %s461, %s461
                $region109: #{recursive_layer_forward.1} parent=98 // loop_header_branch
                  %519 = sbr.rel (%p517) target = $region113
                $region110: #{recursive_layer_forward.1} parent=98 // loop_body
                  %v523 = vld [vmem:[%s521] sm:$0xf]
                  %524 = vst [vmem:[%s522] sm:$0xf] %v523
                  %v525 = vld [vmem:[%s521 + $0x4] sm:$0xf]
                  %526 = vst [vmem:[%s522 + $0x4] sm:$0xf] %v525
                  %v527 = vld [vmem:[%s521 + $0x10] sm:$0xf]
                  %528 = vst [vmem:[%s522 + $0x8] sm:$0xf] %v527
                  %v529 = vld [vmem:[%s521 + $0x14] sm:$0xf]
                  %530 = vst [vmem:[%s522 + $0xc] sm:$0xf] %v529
                  %v531 = vld [vmem:[%s521 + $0x20] sm:$0xf]
                  %532 = vst [vmem:[%s522 + $0x10] sm:$0xf] %v531
                  %v533 = vld [vmem:[%s521 + $0x24] sm:$0xf]
                  %534 = vst [vmem:[%s522 + $0x14] sm:$0xf] %v533
                  %v535 = vld [vmem:[%s521 + $0x30] sm:$0xf]
                  %536 = vst [vmem:[%s522 + $0x18] sm:$0xf] %v535
                  %v537 = vld [vmem:[%s521 + $0x34] sm:$0xf]
                  %538 = vst [vmem:[%s522 + $0x1c] sm:$0xf] %v537
                  %v539 = vld [vmem:[%s521 + $0x40] sm:$0xf]
                  %540 = vst [vmem:[%s522 + $0x20] sm:$0xf] %v539
                  %v541 = vld [vmem:[%s521 + $0x44] sm:$0xf]
                  %542 = vst [vmem:[%s522 + $0x24] sm:$0xf] %v541
                  %v543 = vld [vmem:[%s521 + $0x50] sm:$0xf]
                  %544 = vst [vmem:[%s522 + $0x28] sm:$0xf] %v543
                  %v545 = vld [vmem:[%s521 + $0x54] sm:$0xf]
                  %546 = vst [vmem:[%s522 + $0x2c] sm:$0xf] %v545
                $region111: #{recursive_layer_forward.1} parent=98 // loop_footer
                  %s520 = sadd.s32 1, %s516
                $region112: #{recursive_layer_forward.1} parent=98 // loop_footer_branch
                  %515 = sbr.rel target = $region108
                $region113: #{recursive_layer_forward.1} parent=98 // loop_exit
                  _
              $region99: #{recursive_layer_forward.1} parent=83 // pred_fallthru
                _
            $region84: #{recursive_layer_forward.1} parent=79 // pred_fallthru
              _
            // Predicated region
            $region85: #{recursive_layer_forward.1} parent=79 // pred_check
              _
            $region86: #{recursive_layer_forward.1} parent=79 // pred_check_branch
              %470 = sbr.rel (0) target = $region88
            $region87: #{recursive_layer_forward.1} parent=79 // pred_region
              loop: start=0, step=1, limit=1
              $region89: #{recursive_layer_forward.1} parent=87 // loop_pre_header
                _
              $region90: #{recursive_layer_forward.1} parent=87 // loop_header
                %s473 = sphi 0, %s477
                %p474 = scmp.ge.s32.totalorder %s473, 1
                %s478 = sphi %s464, %s464
                %s479 = sphi %s461, %s461
              $region91: #{recursive_layer_forward.1} parent=87 // loop_header_branch
                %476 = sbr.rel (%p474) target = $region95
              $region92: #{recursive_layer_forward.1} parent=87 // loop_body
                %v480 = vld [vmem:[%s478] sm:$0xf]
                %481 = vst [vmem:[%s479] sm:$0xf] %v480
                %v482 = vld [vmem:[%s478 + $0x4] sm:$0xf]
                %483 = vst [vmem:[%s479 + $0x4] sm:$0xf] %v482
                %v484 = vld [vmem:[%s478 + $0x10] sm:$0xf]
                %485 = vst [vmem:[%s479 + $0x8] sm:$0xf] %v484
                %v486 = vld [vmem:[%s478 + $0x14] sm:$0xf]
                %487 = vst [vmem:[%s479 + $0xc] sm:$0xf] %v486
                %v488 = vld [vmem:[%s478 + $0x20] sm:$0xf]
                %489 = vst [vmem:[%s479 + $0x10] sm:$0xf] %v488
                %v490 = vld [vmem:[%s478 + $0x24] sm:$0xf]
                %491 = vst [vmem:[%s479 + $0x14] sm:$0xf] %v490
                %v492 = vld [vmem:[%s478 + $0x30] sm:$0xf]
                %493 = vst [vmem:[%s479 + $0x18] sm:$0xf] %v492
                %v494 = vld [vmem:[%s478 + $0x34] sm:$0xf]
                %495 = vst [vmem:[%s479 + $0x1c] sm:$0xf] %v494
                %v496 = vld [vmem:[%s478 + $0x40] sm:$0xf]
                %497 = vst [vmem:[%s479 + $0x20] sm:$0xf] %v496
                %v498 = vld [vmem:[%s478 + $0x44] sm:$0xf]
                %499 = vst [vmem:[%s479 + $0x24] sm:$0xf] %v498
                %v500 = vld [vmem:[%s478 + $0x50] sm:$0xf]
                %501 = vst [vmem:[%s479 + $0x28] sm:$0xf] %v500
                %v502 = vld [vmem:[%s478 + $0x54] sm:$0xf]
                %503 = vst [vmem:[%s479 + $0x2c] sm:$0xf] %v502
              $region93: #{recursive_layer_forward.1} parent=87 // loop_footer
                %s477 = sadd.s32 1, %s473
              $region94: #{recursive_layer_forward.1} parent=87 // loop_footer_branch
                %472 = sbr.rel target = $region90
              $region95: #{recursive_layer_forward.1} parent=87 // loop_exit
                _
            $region88: #{recursive_layer_forward.1} parent=79 // pred_fallthru
              _
          $region80: #{recursive_layer_forward.1} parent=75 // pred_fallthru
            _
          %547 = vnop
        $region76: #{recursive_layer_forward.1} parent=71 // pred_fallthru
          _
        // Predicated region
        $region114: #{recursive_layer_forward.1} parent=71 // pred_check
          %p548 = pneg %p68
        $region115: #{recursive_layer_forward.1} parent=71 // pred_check_branch
          %550 = sbr.rel (%p548) target = $region117
        $region116: #{recursive_layer_forward.1} parent=71 // pred_region
          %s551 = smul.u32 2, %s22
          %p552 = scmp.lt.s32.totalorder %s551, 3
          %s553 = scalar_select %p552, %s551, 3
          %s554 = smul.addr %s553, 4
          %s555 = scalar_lea.vmem %s1, %s554
          %s556 = smul.u32 2, %s22
        $region117: #{recursive_layer_forward.1} parent=71 // pred_fallthru
          _
      $region72: #{recursive_layer_forward.1} parent=5 // pred_fallthru
        _
      %p557 = scmp.le.s32.totalorder 1, %s22
      %p558 = scmp.lt.s32.totalorder %s22, 3
      %p559 = pnand %p557, %p558
      %p560 = pneg %p559
      // Predicated region
      $region118: #{recursive_layer_forward.1} parent=5 // pred_check
        _
      $region119: #{recursive_layer_forward.1} parent=5 // pred_check_branch
        %562 = sbr.rel (%p559) target = $region121
      $region120: #{recursive_layer_forward.1} parent=5 // pred_region
        %s563 = ssub.s32 %s22, 1
        %s564 = sand.u32 %s35, 1
        %s565 = sand.u32 %s35, 1
        %s566 = smul.addr %s565, 48
        %s567 = scalar_lea.vmem [#allocation4], %s566
        // Predicated region
        $region122: #{recursive_layer_forward.1} parent=120 // pred_check
          %p568 = pneg %p48
        $region123: #{recursive_layer_forward.1} parent=120 // pred_check_branch
          %570 = sbr.rel (%p568) target = $region125
        $region124: #{recursive_layer_forward.1} parent=120 // pred_region
          _
        $region125: #{recursive_layer_forward.1} parent=120 // pred_fallthru
          _
        %s571 = sand.u32 %s35, 1
        %s572 = sand.u32 %s35, 1
        %s573 = smul.addr %s572, 48
        %s574 = scalar_lea.vmem [#allocation4], %s573
        %p575 = pneg %p48
        %p576 = pneg %p45
        %s577 = smul.u32 2, %s27
        %p578 = scmp.lt.s32.totalorder %s577, 3
        %s579 = scalar_select %p578, %s577, 3
        %s580 = smul.addr %s579, 4
        %s581 = scalar_lea.vmem %s1, %s580
        %p582 = pneg %p74
        %p583 = pneg %p71
        %p584 = pneg %p95
        %p585 = pneg %p92
        %p586 = pneg %p116
        %p587 = pneg %p113
        %p588 = pneg %p137
        %p589 = pneg %p134
        %p590 = pneg %p158
        %p591 = pneg %p155
        %p592 = pneg %p179
        %p593 = pneg %p176
        %p594 = pneg %p200
        %p595 = pneg %p197
        %p596 = pneg %p221
        %p597 = pneg %p218
        %p598 = pneg %p242
        %p599 = pneg %p239
        %p600 = pneg %p263
        %p601 = pneg %p260
        %p602 = pneg %p284
        %p603 = pneg %p281
        %p604 = pneg %p305
        %p605 = pneg %p302
        %p606 = pneg %p326
        %p607 = pneg %p323
        %p608 = pneg %p347
        %p609 = pneg %p344
        %p610 = pneg %p368
        %p611 = pneg %p365
        %p612 = pneg %p394
        %p613 = pneg %p391
        %s614 = smul.u32 2, %s27
        %p615 = scmp.lt.s32.totalorder %s614, 3
        %s616 = scalar_select %p615, %s614, 3
        %s617 = smul.addr %s616, 8
        %s618 = scalar_lea.vmem %s16, %s617
        %s619 = smul.u32 2, %s27
        %s620 = smul.u32 2, %s27
        %p621 = scmp.lt.s32.totalorder %s620, 3
        %s622 = scalar_select %p621, %s620, 3
        %s623 = smul.addr %s622, 4
        %s624 = scalar_lea.vmem %s1, %s623
        %s625 = smul.u32 2, %s27
        %s626 = smul.u32 2, %s27
        %p627 = scmp.lt.s32.totalorder %s626, 3
        %s628 = scalar_select %p627, %s626, 3
        %s629 = smul.addr %s628, 8
        %s630 = scalar_lea.vmem %s16, %s629
        %s631 = smul.u32 2, %s27
        %v633 = vld [vmem:[%s567] sm:$0xf]
        %v634 = vld [vmem:[%s567 + $0x4] sm:$0xf]
        %v635 = vld [vmem:[%s567 + $0x8] sm:$0xf]
        %v636 = vld [vmem:[%s567 + $0xc] sm:$0xf]
        %v637 = vld [vmem:[%s567 + $0x10] sm:$0xf]
        %v638 = vld [vmem:[%s567 + $0x14] sm:$0xf]
        %v639 = vld [vmem:[%s567 + $0x18] sm:$0xf]
        %v640 = vld [vmem:[%s567 + $0x1c] sm:$0xf]
        %v641 = vld [vmem:[%s567 + $0x20] sm:$0xf]
        %v642 = vld [vmem:[%s567 + $0x24] sm:$0xf]
        %v643 = vld [vmem:[%s567 + $0x28] sm:$0xf]
        %v644 = vld [vmem:[%s567 + $0x2c] sm:$0xf]
        %v645 = vld [vmem:[%s2] sm:$0xf]
        %v646 = vld [vmem:[%s2 + $0x4] sm:$0x7]
        %v647 = vld [vmem:[%s3] sm:$0x1]
        %v649 = vlaneseq
        %v650 = vshrl.u32 %v649, 7
        %v651 = vsub.s32 0, %v650
        %v652 = vrot.slane %v647, %v651
        %v666 = vunpack.c.l.b16 %v633
        %v667 = vunpack.c.l.b16 %v634
        %v668 = vunpack.c.l.b16 %v635
        %v669 = vunpack.c.l.b16 %v636
        %v670 = vunpack.c.l.b16 %v637
        %v671 = vunpack.c.l.b16 %v638
        %v672 = vunpack.c.l.b16 %v639
        %v673 = vunpack.c.l.b16 %v640
        %v674 = vunpack.c.l.b16 %v641
        %v675 = vunpack.c.l.b16 %v642
        %v676 = vunpack.c.l.b16 %v643
        %v677 = vunpack.c.l.b16 %v644
        %v678 = vpack.c.b16 %v667, %v666
        %v679 = vpack.c.b16 %v669, %v668
        %v680 = vpack.c.b16 %v671, %v670
        %v681 = vpack.c.b16 %v673, %v672
        %v682 = vpack.c.b16 %v675, %v674
        %v683 = vpack.c.b16 %v677, %v676
        %v686 = vunpack.c.l.b16 %v645
        %v687 = vunpack.c.l.b16 %v646
        %v688 = vpack.c.b16 %v687, %v686
        %vm689 = vcmask 113664
        %v691 = vsel %vm689, %v678, 0
        %v694 = vsel %vm689, %v679, 0
        %v697 = vsel %vm689, %v680, 0
        %v700 = vsel %vm689, %v681, 0
        %v703 = vsel %vm689, %v682, 0
        %v706 = vsel %vm689, %v683, 0
        %vm708 = vcmask 1046528
        %v710 = vsel %vm708, %v688, 0
        %712 = vmatprep.subr.bf16.mxu0 0
        %713 = vmatpush1.bf16.msra.mxu0 %v710
        %714 = vmatprep.subr.bf16.mxu0 0
        %715 = vmatpush1.bf16.msra.mxu0 0
        %716 = vmatprep.subr.bf16.mxu0 0
        %717 = vmatpush1.bf16.msra.mxu0 0
        %718 = vmatprep.subr.bf16.mxu0 0
        %719 = vmatpush1.bf16.msra.mxu0 0
        %720 = vmatprep.subr.bf16.mxu0 0
        %721 = vmatpush1.bf16.msra.mxu0 0
        %722 = vmatprep.subr.bf16.mxu0 0
        %723 = vmatpush1.bf16.msra.mxu0 0
        %724 = vmatprep.subr.bf16.mxu0 0
        %725 = vmatpush1.bf16.msra.mxu0 0
        %726 = vmatprep.subr.bf16.mxu0 0
        %727 = vmatpush1.bf16.msra.mxu0 0
        %728 = vmatprep.subr.bf16.mxu0 0
        %729 = vmatpush1.bf16.msra.mxu0 0
        %730 = vmatprep.subr.bf16.mxu0 0
        %731 = vmatpush1.bf16.msra.mxu0 0
        %732 = vmatprep.subr.bf16.mxu0 0
        %733 = vmatpush1.bf16.msra.mxu0 0
        %734 = vmatprep.subr.bf16.mxu0 0
        %735 = vmatpush1.bf16.msra.mxu0 0
        %736 = vmatprep.subr.bf16.mxu0 0
        %737 = vmatpush1.bf16.msra.mxu0 0
        %738 = vmatprep.subr.bf16.mxu0 0
        %739 = vmatpush1.bf16.msra.mxu0 0
        %740 = vmatprep.subr.bf16.mxu0 0
        %741 = vmatpush1.bf16.msra.mxu0 0
        %742 = vmatprep.subr.bf16.mxu0 0
        %743 = vmatpush1.bf16.msra.mxu0 0
        %744 = vmatprep.mubr.bf16.mxu0 0
        %745 = vmatmul.mubr.bf16.gmra.mrb[0].mxu0 %v691
        %v746 = vpop.f32.mrb[0].mxu0
        %v747 = vadd.f32 %v652, %v746
        %v748 = vpop.f32.mrb[0].mxu0
        %v749 = vpop.f32.mrb[0].mxu0
        %v750 = vadd.f32 %v652, %v749
        %v751 = vpop.f32.mrb[0].mxu0
        %752 = vmatprep.mubr.bf16.mxu0 0
        %753 = vmatmul.mubr.bf16.gmra.mrb[0].mxu0 %v694
        %v754 = vpop.f32.mrb[0].mxu0
        %v755 = vadd.f32 %v652, %v754
        %v756 = vpop.f32.mrb[0].mxu0
        %v757 = vpop.f32.mrb[0].mxu0
        %v758 = vadd.f32 %v652, %v757
        %v759 = vpop.f32.mrb[0].mxu0
        %760 = vmatprep.mubr.bf16.mxu0 0
        %761 = vmatmul.mubr.bf16.gmra.mrb[0].mxu0 %v697
        %v762 = vpop.f32.mrb[0].mxu0
        %v763 = vadd.f32 %v652, %v762
        %v764 = vpop.f32.mrb[0].mxu0
        %v765 = vpop.f32.mrb[0].mxu0
        %v766 = vadd.f32 %v652, %v765
        %v767 = vpop.f32.mrb[0].mxu0
        %768 = vmatprep.mubr.bf16.mxu0 0
        %769 = vmatmul.mubr.bf16.gmra.mrb[0].mxu0 %v700
        %v770 = vpop.f32.mrb[0].mxu0
        %v771 = vadd.f32 %v652, %v770
        %v772 = vpop.f32.mrb[0].mxu0
        %v773 = vpop.f32.mrb[0].mxu0
        %v774 = vadd.f32 %v652, %v773
        %v775 = vpop.f32.mrb[0].mxu0
        %776 = vmatprep.mubr.bf16.mxu0 0
        %777 = vmatmul.mubr.bf16.gmra.mrb[0].mxu0 %v703
        %v778 = vpop.f32.mrb[0].mxu0
        %v779 = vadd.f32 %v652, %v778
        %v780 = vpop.f32.mrb[0].mxu0
        %v781 = vpop.f32.mrb[0].mxu0
        %v782 = vadd.f32 %v652, %v781
        %v783 = vpop.f32.mrb[0].mxu0
        %784 = vmatprep.mubr.bf16.mxu0 0
        %785 = vmatmul.mubr.bf16.gmra.mrb[0].mxu0 %v706
        %v786 = vpop.f32.mrb[0].mxu0
        %v787 = vadd.f32 %v652, %v786
        %v788 = vpop.f32.mrb[0].mxu0
        %v789 = vpop.f32.mrb[0].mxu0
        %v790 = vadd.f32 %v652, %v789
        %v791 = vpop.f32.mrb[0].mxu0
        %792 = vdwg.mxu0
        %v793 = vmax.f32 %v747, 0.0
        %v794 = vmax.f32 %v750, 0.0
        %v795 = vmax.f32 %v755, 0.0
        %v796 = vmax.f32 %v758, 0.0
        %v797 = vmax.f32 %v763, 0.0
        %v798 = vmax.f32 %v766, 0.0
        %v799 = vmax.f32 %v771, 0.0
        %v800 = vmax.f32 %v774, 0.0
        %v801 = vmax.f32 %v779, 0.0
        %v802 = vmax.f32 %v782, 0.0
        %v803 = vmax.f32 %v787, 0.0
        %v804 = vmax.f32 %v790, 0.0
        %v805 = vpack.c.bf16 %v794, %v793
        %v806 = vpack.c.bf16 %v796, %v795
        %v807 = vpack.c.bf16 %v798, %v797
        %v808 = vpack.c.bf16 %v800, %v799
        %v809 = vpack.c.bf16 %v802, %v801
        %v810 = vpack.c.bf16 %v804, %v803
        %vm811 = vcmask 523264
        %812 = vst.msk [vmem:[#allocation2] sm:$0xff] %vm811, %v805
        %813 = vst.msk [vmem:[#allocation2 + $0x8] sm:$0xff] %vm811, %v806
        %814 = vst.msk [vmem:[#allocation2 + $0x10] sm:$0xff] %vm811, %v807
        %815 = vst.msk [vmem:[#allocation2 + $0x18] sm:$0xff] %vm811, %v808
        %816 = vst.msk [vmem:[#allocation2 + $0x20] sm:$0xff] %vm811, %v809
        %817 = vst.msk [vmem:[#allocation2 + $0x28] sm:$0xff] %vm811, %v810
        %v818 = vld [vmem:[#allocation2 + $0x10] sm:$0xff]
        %v819 = vld [vmem:[#allocation2 + $0x18] sm:$0xff]
        %v820 = vld [vmem:[#allocation2 + $0x20] sm:$0xff]
        %v821 = vld [vmem:[#allocation2 + $0x28] sm:$0xff]
        %v822 = vld [vmem:[%s4] sm:$0xff]
        %v823 = vld [vmem:[%s4 + $0x8] sm:$0xff]
        %v824 = vld [vmem:[%s4 + $0x10] sm:$0xff]
        %v825 = vld [vmem:[%s4 + $0x18] sm:$0xff]
        %v826 = vld [vmem:[%s4 + $0x20] sm:$0xff]
        %v827 = vld [vmem:[%s4 + $0x28] sm:$0xff]
        %v828 = vld [vmem:[%s4 + $0x30] sm:$0xff]
        %v829 = vld [vmem:[%s4 + $0x38] sm:$0xff]
        %v830 = vld [vmem:[%s5] sm:$0x3]
        %v832 = vlaneseq
        %v833 = vshrl.u32 %v832, 7
        %v834 = vsub.s32 0, %v833
        %v835 = vrot.slane %v830, %v834
        %v836 = vlaneseq
        %v837 = vshrl.u32 %v836, 7
        %v838 = vsub.s32 1, %v837
        %v839 = vrot.slane %v830, %v838
        %v850 = vunpack.c.l.b16 %v822
        %v851 = vunpack.c.h.b16 %v822
        %v852 = vunpack.c.l.b16 %v823
        %v853 = vunpack.c.h.b16 %v823
        %v854 = vunpack.c.l.b16 %v824
        %v855 = vunpack.c.h.b16 %v824
        %v856 = vunpack.c.l.b16 %v825
        %v857 = vunpack.c.h.b16 %v825
        %v858 = vunpack.c.l.b16 %v826
        %v859 = vunpack.c.h.b16 %v826
        %v860 = vunpack.c.l.b16 %v827
        %v861 = vunpack.c.h.b16 %v827
        %v862 = vunpack.c.l.b16 %v828
        %v863 = vunpack.c.h.b16 %v828
        %v864 = vunpack.c.l.b16 %v829
        %v865 = vunpack.c.h.b16 %v829
        %v866 = vpack.c.b16 %v852, %v850
        %v867 = vpack.c.b16 %v853, %v851
        %v868 = vpack.c.b16 %v856, %v854
        %v869 = vpack.c.b16 %v857, %v855
        %v870 = vpack.c.b16 %v860, %v858
        %v871 = vpack.c.b16 %v861, %v859
        %v872 = vpack.c.b16 %v864, %v862
        %v873 = vpack.c.b16 %v865, %v863
        %v883 = vsel %vm811, %v818, 0
        %v886 = vsel %vm811, %v819, 0
        %v889 = vsel %vm811, %v820, 0
        %v892 = vsel %vm811, %v821, 0
        %894 = vmatprep.subr.bf16.mxu0 %v867
        %895 = vmatpush1.bf16.msra.mxu0 %v866
        %896 = vmatprep.subr.bf16.mxu0 %v869
        %897 = vmatpush1.bf16.msra.mxu0 %v868
        %898 = vmatprep.subr.bf16.mxu0 %v871
        %899 = vmatpush1.bf16.msra.mxu0 %v870
        %900 = vmatprep.subr.bf16.mxu0 %v873
        %901 = vmatpush1.bf16.msra.mxu0 %v872
        %902 = vmatprep.subr.bf16.mxu0 0
        %903 = vmatpush1.bf16.msra.mxu0 0
        %904 = vmatprep.subr.bf16.mxu0 0
        %905 = vmatpush1.bf16.msra.mxu0 0
        %906 = vmatprep.subr.bf16.mxu0 0
        %907 = vmatpush1.bf16.msra.mxu0 0
        %908 = vmatprep.subr.bf16.mxu0 0
        %909 = vmatpush1.bf16.msra.mxu0 0
        %910 = vmatprep.subr.bf16.mxu0 0
        %911 = vmatpush1.bf16.msra.mxu0 0
        %912 = vmatprep.subr.bf16.mxu0 0
        %913 = vmatpush1.bf16.msra.mxu0 0
        %914 = vmatprep.subr.bf16.mxu0 0
        %915 = vmatpush1.bf16.msra.mxu0 0
        %916 = vmatprep.subr.bf16.mxu0 0
        %917 = vmatpush1.bf16.msra.mxu0 0
        %918 = vmatprep.subr.bf16.mxu0 0
        %919 = vmatpush1.bf16.msra.mxu0 0
        %920 = vmatprep.subr.bf16.mxu0 0
        %921 = vmatpush1.bf16.msra.mxu0 0
        %922 = vmatprep.subr.bf16.mxu0 0
        %923 = vmatpush1.bf16.msra.mxu0 0
        %924 = vmatprep.subr.bf16.mxu0 0
        %925 = vmatpush1.bf16.msra.mxu0 0
        %926 = vmatprep.mubr.bf16.mxu0 0
        %927 = vmatmul.mubr.bf16.gmra.mrb[0].mxu0 %v883
        %v928 = vpop.f32.mrb[0].mxu0
        %v929 = vadd.f32 %v835, %v928
        %v930 = vpop.f32.mrb[0].mxu0
        %v931 = vadd.f32 %v839, %v930
        %v932 = vpop.f32.mrb[0].mxu0
        %v933 = vadd.f32 %v835, %v932
        %v934 = vpop.f32.mrb[0].mxu0
        %v935 = vadd.f32 %v839, %v934
        %936 = vmatprep.mubr.bf16.mxu0 0
        %937 = vmatmul.mubr.bf16.gmra.mrb[0].mxu0 %v886
        %v938 = vpop.f32.mrb[0].mxu0
        %v939 = vadd.f32 %v835, %v938
        %v940 = vpop.f32.mrb[0].mxu0
        %v941 = vadd.f32 %v839, %v940
        %v942 = vpop.f32.mrb[0].mxu0
        %v943 = vadd.f32 %v835, %v942
        %v944 = vpop.f32.mrb[0].mxu0
        %v945 = vadd.f32 %v839, %v944
        %946 = vmatprep.mubr.bf16.mxu0 0
        %947 = vmatmul.mubr.bf16.gmra.mrb[0].mxu0 %v889
        %v948 = vpop.f32.mrb[0].mxu0
        %v949 = vadd.f32 %v835, %v948
        %v950 = vpop.f32.mrb[0].mxu0
        %v951 = vadd.f32 %v839, %v950
        %v952 = vpop.f32.mrb[0].mxu0
        %v953 = vadd.f32 %v835, %v952
        %v954 = vpop.f32.mrb[0].mxu0
        %v955 = vadd.f32 %v839, %v954
        %956 = vmatprep.mubr.bf16.mxu0 0
        %957 = vmatmul.mubr.bf16.gmra.mrb[0].mxu0 %v892
        %v958 = vpop.f32.mrb[0].mxu0
        %v959 = vadd.f32 %v835, %v958
        %v960 = vpop.f32.mrb[0].mxu0
        %v961 = vadd.f32 %v839, %v960
        %v962 = vpop.f32.mrb[0].mxu0
        %v963 = vadd.f32 %v835, %v962
        %v964 = vpop.f32.mrb[0].mxu0
        %v965 = vadd.f32 %v839, %v964
        %966 = vdwg.mxu0
        %v967 = vmax.f32 %v929, 0.0
        %v968 = vmax.f32 %v931, 0.0
        %v969 = vmax.f32 %v933, 0.0
        %v970 = vmax.f32 %v935, 0.0
        %v971 = vmax.f32 %v939, 0.0
        %v972 = vmax.f32 %v941, 0.0
        %v973 = vmax.f32 %v943, 0.0
        %v974 = vmax.f32 %v945, 0.0
        %v975 = vmax.f32 %v949, 0.0
        %v976 = vmax.f32 %v951, 0.0
        %v977 = vmax.f32 %v953, 0.0
        %v978 = vmax.f32 %v955, 0.0
        %v979 = vmax.f32 %v959, 0.0
        %v980 = vmax.f32 %v961, 0.0
        %v981 = vmax.f32 %v963, 0.0
        %v982 = vmax.f32 %v965, 0.0
        %v983 = vpack.c.bf16 %v969, %v967
        %v984 = vpack.c.bf16 %v970, %v968
        %v985 = vpack.c.bf16 %v973, %v971
        %v986 = vpack.c.bf16 %v974, %v972
        %v987 = vpack.c.bf16 %v977, %v975
        %v988 = vpack.c.bf16 %v978, %v976
        %v989 = vpack.c.bf16 %v981, %v979
        %v990 = vpack.c.bf16 %v982, %v980
        %v991 = vld [vmem:[%s6] sm:$0xf]
        %v992 = vld [vmem:[%s6 + $0x4] sm:$0xf]
        %v993 = vld [vmem:[%s6 + $0x8] sm:$0xf]
        %v994 = vld [vmem:[%s6 + $0xc] sm:$0xf]
        %v995 = vld [vmem:[%s6 + $0x10] sm:$0xf]
        %v996 = vld [vmem:[%s6 + $0x14] sm:$0xf]
        %v997 = vld [vmem:[%s6 + $0x18] sm:$0xf]
        %v998 = vld [vmem:[%s6 + $0x1c] sm:$0xf]
        %v999 = vld [vmem:[%s6 + $0x20] sm:$0xf]
        %v1000 = vld [vmem:[%s6 + $0x24] sm:$0xf]
        %v1001 = vld [vmem:[%s6 + $0x28] sm:$0xf]
        %v1002 = vld [vmem:[%s6 + $0x2c] sm:$0xf]
        %v1003 = vld [vmem:[%s6 + $0x30] sm:$0xf]
        %v1004 = vld [vmem:[%s6 + $0x34] sm:$0xf]
        %v1005 = vld [vmem:[%s6 + $0x38] sm:$0xf]
        %v1006 = vld [vmem:[%s6 + $0x3c] sm:$0xf]
        %v1007 = vld [vmem:[%s6 + $0x40] sm:$0xf]
        %v1008 = vld [vmem:[%s6 + $0x44] sm:$0xf]
        %v1009 = vld [vmem:[%s6 + $0x48] sm:$0xf]
        %v1010 = vld [vmem:[%s6 + $0x4c] sm:$0xf]
        %v1011 = vld [vmem:[%s6 + $0x50] sm:$0xf]
        %v1012 = vld [vmem:[%s6 + $0x54] sm:$0xf]
        %v1013 = vld [vmem:[%s6 + $0x58] sm:$0xf]
        %v1014 = vld [vmem:[%s6 + $0x5c] sm:$0xf]
        %v1015 = vld [vmem:[%s7] sm:$0x1]
        %v1017 = vlaneseq
        %v1018 = vshrl.u32 %v1017, 7
        %v1019 = vsub.s32 0, %v1018
        %v1020 = vrot.slane %v1015, %v1019
        %v1046 = vunpack.c.l.b16 %v991
        %v1047 = vunpack.c.l.b16 %v992
        %v1048 = vunpack.c.l.b16 %v993
        %v1049 = vunpack.c.l.b16 %v994
        %v1050 = vunpack.c.l.b16 %v995
        %v1051 = vunpack.c.l.b16 %v996
        %v1052 = vunpack.c.l.b16 %v997
        %v1053 = vunpack.c.l.b16 %v998
        %v1054 = vunpack.c.l.b16 %v999
        %v1055 = vunpack.c.l.b16 %v1000
        %v1056 = vunpack.c.l.b16 %v1001
        %v1057 = vunpack.c.l.b16 %v1002
        %v1058 = vunpack.c.l.b16 %v1003
        %v1059 = vunpack.c.l.b16 %v1004
        %v1060 = vunpack.c.l.b16 %v1005
        %v1061 = vunpack.c.l.b16 %v1006
        %v1062 = vunpack.c.l.b16 %v1007
        %v1063 = vunpack.c.l.b16 %v1008
        %v1064 = vunpack.c.l.b16 %v1009
        %v1065 = vunpack.c.l.b16 %v1010
        %v1066 = vunpack.c.l.b16 %v1011
        %v1067 = vunpack.c.l.b16 %v1012
        %v1068 = vunpack.c.l.b16 %v1013
        %v1069 = vunpack.c.l.b16 %v1014
        %v1070 = vpack.c.b16 %v1047, %v1046
        %v1071 = vpack.c.b16 %v1049, %v1048
        %v1072 = vpack.c.b16 %v1051, %v1050
        %v1073 = vpack.c.b16 %v1053, %v1052
        %v1074 = vpack.c.b16 %v1055, %v1054
        %v1075 = vpack.c.b16 %v1057, %v1056
        %v1076 = vpack.c.b16 %v1059, %v1058
        %v1077 = vpack.c.b16 %v1061, %v1060
        %v1078 = vpack.c.b16 %v1063, %v1062
        %v1079 = vpack.c.b16 %v1065, %v1064
        %v1080 = vpack.c.b16 %v1067, %v1066
        %v1081 = vpack.c.b16 %v1069, %v1068
        %v1095 = vsel %vm811, %v984, 0
        %v1098 = vsel %vm811, %v986, 0
        %v1101 = vsel %vm811, %v988, 0
        %v1104 = vsel %vm811, %v990, 0
        %1106 = vmatprep.subr.bf16.mxu0 0
        %1107 = vmatpush1.bf16.msra.mxu0 %v1070
        %1108 = vmatprep.subr.bf16.mxu0 0
        %1109 = vmatpush1.bf16.msra.mxu0 %v1071
        %1110 = vmatprep.subr.bf16.mxu0 0
        %1111 = vmatpush1.bf16.msra.mxu0 %v1072
        %1112 = vmatprep.subr.bf16.mxu0 0
        %1113 = vmatpush1.bf16.msra.mxu0 %v1073
        %1114 = vmatprep.subr.bf16.mxu0 0
        %1115 = vmatpush1.bf16.msra.mxu0 %v1074
        %1116 = vmatprep.subr.bf16.mxu0 0
        %1117 = vmatpush1.bf16.msra.mxu0 %v1075
        %1118 = vmatprep.subr.bf16.mxu0 0
        %1119 = vmatpush1.bf16.msra.mxu0 %v1076
        %1120 = vmatprep.subr.bf16.mxu0 0
        %1121 = vmatpush1.bf16.msra.mxu0 %v1077
        %1122 = vmatprep.subr.bf16.mxu0 0
        %1123 = vmatpush1.bf16.msra.mxu0 %v1078
        %1124 = vmatprep.subr.bf16.mxu0 0
        %1125 = vmatpush1.bf16.msra.mxu0 %v1079
        %1126 = vmatprep.subr.bf16.mxu0 0
        %1127 = vmatpush1.bf16.msra.mxu0 %v1080
        %1128 = vmatprep.subr.bf16.mxu0 0
        %1129 = vmatpush1.bf16.msra.mxu0 %v1081
        %1130 = vmatprep.subr.bf16.mxu0 0
        %1131 = vmatpush1.bf16.msra.mxu0 0
        %1132 = vmatprep.subr.bf16.mxu0 0
        %1133 = vmatpush1.bf16.msra.mxu0 0
        %1134 = vmatprep.subr.bf16.mxu0 0
        %1135 = vmatpush1.bf16.msra.mxu0 0
        %1136 = vmatprep.subr.bf16.mxu0 0
        %1137 = vmatpush1.bf16.msra.mxu0 0
        %1138 = vmatprep.mubr.bf16.mxu0 %v1095
        %1139 = vmatmul.mubr.bf16.gmra.mrb[0].mxu0 %v983
        %v1140 = vpop.f32.mrb[0].mxu0
        %v1141 = vadd.f32 %v1020, %v1140
        %v1142 = vpop.f32.mrb[0].mxu0
        %v1143 = vpop.f32.mrb[0].mxu0
        %v1144 = vadd.f32 %v1020, %v1143
        %v1145 = vpop.f32.mrb[0].mxu0
        %1146 = vmatprep.mubr.bf16.mxu0 %v1098
        %1147 = vmatmul.mubr.bf16.gmra.mrb[0].mxu0 %v985
        %v1148 = vpop.f32.mrb[0].mxu0
        %v1149 = vadd.f32 %v1020, %v1148
        %v1150 = vpop.f32.mrb[0].mxu0
        %v1151 = vpop.f32.mrb[0].mxu0
        %v1152 = vadd.f32 %v1020, %v1151
        %v1153 = vpop.f32.mrb[0].mxu0
        %1154 = vmatprep.mubr.bf16.mxu0 %v1101
        %1155 = vmatmul.mubr.bf16.gmra.mrb[0].mxu0 %v987
        %v1156 = vpop.f32.mrb[0].mxu0
        %v1157 = vadd.f32 %v1020, %v1156
        %v1158 = vpop.f32.mrb[0].mxu0
        %v1159 = vpop.f32.mrb[0].mxu0
        %v1160 = vadd.f32 %v1020, %v1159
        %v1161 = vpop.f32.mrb[0].mxu0
        %1162 = vmatprep.mubr.bf16.mxu0 %v1104
        %1163 = vmatmul.mubr.bf16.gmra.mrb[0].mxu0 %v989
        %v1164 = vpop.f32.mrb[0].mxu0
        %v1165 = vadd.f32 %v1020, %v1164
        %v1166 = vpop.f32.mrb[0].mxu0
        %v1167 = vpop.f32.mrb[0].mxu0
        %v1168 = vadd.f32 %v1020, %v1167
        %v1169 = vpop.f32.mrb[0].mxu0
        %1170 = vdwg.mxu0
        %v1171 = vmax.f32 %v1141, 0.0
        %v1172 = vmax.f32 %v1144, 0.0
        %v1173 = vmax.f32 %v1149, 0.0
        %v1174 = vmax.f32 %v1152, 0.0
        %v1175 = vmax.f32 %v1157, 0.0
        %v1176 = vmax.f32 %v1160, 0.0
        %v1177 = vmax.f32 %v1165, 0.0
        %v1178 = vmax.f32 %v1168, 0.0
        %v1179 = vpack.c.bf16 %v1172, %v1171
        %v1180 = vpack.c.bf16 %v1174, %v1173
        %v1181 = vpack.c.bf16 %v1176, %v1175
        %v1182 = vpack.c.bf16 %v1178, %v1177
        %1183 = vst.msk [vmem:[#allocation3] sm:$0xff] %vm811, %v1179
        %1185 = vrot.lane.b32.xlu0 %v1180, 64
        %v1186 = vpop.permute.xlu0 %1185
        %vm1188 = vcmask 1048064
        %1189 = vst.msk [vmem:[#allocation3] sm:$0xff] %vm1188, %v1186
        %1190 = vst.msk [vmem:[#allocation3 + $0x8] sm:$0xff] %vm811, %v1181
        %1192 = vrot.lane.b32.xlu0 %v1182, 64
        %v1193 = vpop.permute.xlu0 %1192
        %1195 = vst.msk [vmem:[#allocation3 + $0x8] sm:$0xff] %vm1188, %v1193
        %v1196 = vld [vmem:[#allocation2] sm:$0xff]
        %v1197 = vld [vmem:[#allocation2 + $0x8] sm:$0xff]
        %v1198 = vld [vmem:[%s4] sm:$0xff]
        %v1199 = vld [vmem:[%s4 + $0x8] sm:$0xff]
        %v1200 = vld [vmem:[%s4 + $0x10] sm:$0xff]
        %v1201 = vld [vmem:[%s4 + $0x18] sm:$0xff]
        %v1202 = vld [vmem:[%s4 + $0x20] sm:$0xff]
        %v1203 = vld [vmem:[%s4 + $0x28] sm:$0xff]
        %v1204 = vld [vmem:[%s4 + $0x30] sm:$0xff]
        %v1205 = vld [vmem:[%s4 + $0x38] sm:$0xff]
        %v1206 = vld [vmem:[#allocation3] sm:$0xff]
        %v1207 = vld [vmem:[#allocation3 + $0x8] sm:$0xff]
        %v1208 = vld [vmem:[%s4 + $0x40] sm:$0xff]
        %v1209 = vld [vmem:[%s4 + $0x48] sm:$0xff]
        %v1210 = vld [vmem:[%s4 + $0x50] sm:$0xff]
        %v1211 = vld [vmem:[%s4 + $0x58] sm:$0xff]
        %v1212 = vld [vmem:[%s4 + $0x60] sm:$0xff]
        %v1213 = vld [vmem:[%s4 + $0x68] sm:$0xff]
        %v1214 = vld [vmem:[%s4 + $0x70] sm:$0xff]
        %v1215 = vld [vmem:[%s4 + $0x78] sm:$0xff]
        %v1216 = vld [vmem:[%s4 + $0x80] sm:$0xff]
        %v1217 = vld [vmem:[%s4 + $0x88] sm:$0xff]
        %v1218 = vld [vmem:[%s4 + $0x90] sm:$0xff]
        %v1219 = vld [vmem:[%s4 + $0x98] sm:$0xff]
        %v1220 = vld [vmem:[%s4 + $0xa0] sm:$0xff]
        %v1221 = vld [vmem:[%s4 + $0xa8] sm:$0xff]
        %v1222 = vld [vmem:[%s4 + $0xb0] sm:$0xff]
        %v1223 = vld [vmem:[%s4 + $0xb8] sm:$0xff]
        %v1240 = vunpack.c.l.b16 %v1208
        %v1241 = vunpack.c.h.b16 %v1208
        %v1242 = vunpack.c.l.b16 %v1209
        %v1243 = vunpack.c.h.b16 %v1209
        %v1244 = vunpack.c.l.b16 %v1210
        %v1245 = vunpack.c.h.b16 %v1210
        %v1246 = vunpack.c.l.b16 %v1211
        %v1247 = vunpack.c.h.b16 %v1211
        %v1248 = vunpack.c.l.b16 %v1212
        %v1249 = vunpack.c.h.b16 %v1212
        %v1250 = vunpack.c.l.b16 %v1213
        %v1251 = vunpack.c.h.b16 %v1213
        %v1252 = vunpack.c.l.b16 %v1214
        %v1253 = vunpack.c.h.b16 %v1214
        %v1254 = vunpack.c.l.b16 %v1215
        %v1255 = vunpack.c.h.b16 %v1215
        %v1256 = vunpack.c.l.b16 %v1216
        %v1257 = vunpack.c.h.b16 %v1216
        %v1258 = vunpack.c.l.b16 %v1217
        %v1259 = vunpack.c.h.b16 %v1217
        %v1260 = vunpack.c.l.b16 %v1218
        %v1261 = vunpack.c.h.b16 %v1218
        %v1262 = vunpack.c.l.b16 %v1219
        %v1263 = vunpack.c.h.b16 %v1219
        %v1264 = vunpack.c.l.b16 %v1220
        %v1265 = vunpack.c.h.b16 %v1220
        %v1266 = vunpack.c.l.b16 %v1221
        %v1267 = vunpack.c.h.b16 %v1221
        %v1268 = vunpack.c.l.b16 %v1222
        %v1269 = vunpack.c.h.b16 %v1222
        %v1270 = vunpack.c.l.b16 %v1223
        %v1271 = vunpack.c.h.b16 %v1223
        %v1272 = vpack.c.b16 %v1242, %v1240
        %v1273 = vpack.c.b16 %v1243, %v1241
        %v1274 = vpack.c.b16 %v1246, %v1244
        %v1275 = vpack.c.b16 %v1247, %v1245
        %v1276 = vpack.c.b16 %v1250, %v1248
        %v1277 = vpack.c.b16 %v1251, %v1249
        %v1278 = vpack.c.b16 %v1254, %v1252
        %v1279 = vpack.c.b16 %v1255, %v1253
        %v1280 = vpack.c.b16 %v1258, %v1256
        %v1281 = vpack.c.b16 %v1259, %v1257
        %v1282 = vpack.c.b16 %v1262, %v1260
        %v1283 = vpack.c.b16 %v1263, %v1261
        %v1284 = vpack.c.b16 %v1266, %v1264
        %v1285 = vpack.c.b16 %v1267, %v1265
        %v1286 = vpack.c.b16 %v1270, %v1268
        %v1287 = vpack.c.b16 %v1271, %v1269
        %1304 = vmatprep.subr.bf16.mxu0 %v1273
        %1305 = vmatpush1.bf16.msra.mxu0 %v1272
        %1306 = vmatprep.subr.bf16.mxu0 %v1275
        %1307 = vmatpush1.bf16.msra.mxu0 %v1274
        %1308 = vmatprep.subr.bf16.mxu0 %v1277
        %1309 = vmatpush1.bf16.msra.mxu0 %v1276
        %1310 = vmatprep.subr.bf16.mxu0 %v1279
        %1311 = vmatpush1.bf16.msra.mxu0 %v1278
        %1312 = vmatprep.subr.bf16.mxu0 %v1281
        %1313 = vmatpush1.bf16.msra.mxu0 %v1280
        %1314 = vmatprep.subr.bf16.mxu0 %v1283
        %1315 = vmatpush1.bf16.msra.mxu0 %v1282
        %1316 = vmatprep.subr.bf16.mxu0 %v1285
        %1317 = vmatpush1.bf16.msra.mxu0 %v1284
        %1318 = vmatprep.subr.bf16.mxu0 %v1287
        %1319 = vmatpush1.bf16.msra.mxu0 %v1286
        %1320 = vmatprep.subr.bf16.mxu0 0
        %1321 = vmatpush1.bf16.msra.mxu0 0
        %1322 = vmatprep.subr.bf16.mxu0 0
        %1323 = vmatpush1.bf16.msra.mxu0 0
        %1324 = vmatprep.subr.bf16.mxu0 0
        %1325 = vmatpush1.bf16.msra.mxu0 0
        %1326 = vmatprep.subr.bf16.mxu0 0
        %1327 = vmatpush1.bf16.msra.mxu0 0
        %1328 = vmatprep.subr.bf16.mxu0 0
        %1329 = vmatpush1.bf16.msra.mxu0 0
        %1330 = vmatprep.subr.bf16.mxu0 0
        %1331 = vmatpush1.bf16.msra.mxu0 0
        %1332 = vmatprep.subr.bf16.mxu0 0
        %1333 = vmatpush1.bf16.msra.mxu0 0
        %1334 = vmatprep.subr.bf16.mxu0 0
        %1335 = vmatpush1.bf16.msra.mxu0 0
        %1336 = vmatprep.mubr.bf16.mxu0 0
        %1337 = vmatmul.mubr.bf16.gmra.mrb[0].mxu0 %v1206
        %v1338 = vpop.f32.mrb[0].mxu0
        %v1339 = vadd.f32 0.0, %v1338
        %v1340 = vpop.f32.mrb[0].mxu0
        %v1341 = vadd.f32 0.0, %v1340
        %v1342 = vpop.f32.mrb[0].mxu0
        %v1343 = vadd.f32 0.0, %v1342
        %v1344 = vpop.f32.mrb[0].mxu0
        %v1345 = vadd.f32 0.0, %v1344
        %1346 = vmatprep.mubr.bf16.mxu0 0
        %1347 = vmatmul.mubr.bf16.gmra.mrb[0].mxu0 %v1207
        %v1348 = vpop.f32.mrb[0].mxu0
        %v1349 = vadd.f32 0.0, %v1348
        %v1350 = vpop.f32.mrb[0].mxu0
        %v1351 = vadd.f32 0.0, %v1350
        %v1352 = vpop.f32.mrb[0].mxu0
        %v1353 = vadd.f32 0.0, %v1352
        %v1354 = vpop.f32.mrb[0].mxu0
        %v1355 = vadd.f32 0.0, %v1354
        %1356 = vdwg.mxu0
        %v1365 = vunpack.c.l.b16 %v1198
        %v1366 = vunpack.c.h.b16 %v1198
        %v1367 = vunpack.c.l.b16 %v1199
        %v1368 = vunpack.c.h.b16 %v1199
        %v1369 = vunpack.c.l.b16 %v1200
        %v1370 = vunpack.c.h.b16 %v1200
        %v1371 = vunpack.c.l.b16 %v1201
        %v1372 = vunpack.c.h.b16 %v1201
        %v1373 = vunpack.c.l.b16 %v1202
        %v1374 = vunpack.c.h.b16 %v1202
        %v1375 = vunpack.c.l.b16 %v1203
        %v1376 = vunpack.c.h.b16 %v1203
        %v1377 = vunpack.c.l.b16 %v1204
        %v1378 = vunpack.c.h.b16 %v1204
        %v1379 = vunpack.c.l.b16 %v1205
        %v1380 = vunpack.c.h.b16 %v1205
        %v1381 = vpack.c.b16 %v1367, %v1365
        %v1382 = vpack.c.b16 %v1368, %v1366
        %v1383 = vpack.c.b16 %v1371, %v1369
        %v1384 = vpack.c.b16 %v1372, %v1370
        %v1385 = vpack.c.b16 %v1375, %v1373
        %v1386 = vpack.c.b16 %v1376, %v1374
        %v1387 = vpack.c.b16 %v1379, %v1377
        %v1388 = vpack.c.b16 %v1380, %v1378
        %v1398 = vsel %vm811, %v1196, 0
        %v1401 = vsel %vm811, %v1197, 0
        %1403 = vmatprep.subr.bf16.mxu0 %v1382
        %1404 = vmatpush1.bf16.msra.mxu0 %v1381
        %1405 = vmatprep.subr.bf16.mxu0 %v1384
        %1406 = vmatpush1.bf16.msra.mxu0 %v1383
        %1407 = vmatprep.subr.bf16.mxu0 %v1386
        %1408 = vmatpush1.bf16.msra.mxu0 %v1385
        %1409 = vmatprep.subr.bf16.mxu0 %v1388
        %1410 = vmatpush1.bf16.msra.mxu0 %v1387
        %1411 = vmatprep.subr.bf16.mxu0 0
        %1412 = vmatpush1.bf16.msra.mxu0 0
        %1413 = vmatprep.subr.bf16.mxu0 0
        %1414 = vmatpush1.bf16.msra.mxu0 0
        %1415 = vmatprep.subr.bf16.mxu0 0
        %1416 = vmatpush1.bf16.msra.mxu0 0
        %1417 = vmatprep.subr.bf16.mxu0 0
        %1418 = vmatpush1.bf16.msra.mxu0 0
        %1419 = vmatprep.subr.bf16.mxu0 0
        %1420 = vmatpush1.bf16.msra.mxu0 0
        %1421 = vmatprep.subr.bf16.mxu0 0
        %1422 = vmatpush1.bf16.msra.mxu0 0
        %1423 = vmatprep.subr.bf16.mxu0 0
        %1424 = vmatpush1.bf16.msra.mxu0 0
        %1425 = vmatprep.subr.bf16.mxu0 0
        %1426 = vmatpush1.bf16.msra.mxu0 0
        %1427 = vmatprep.subr.bf16.mxu0 0
        %1428 = vmatpush1.bf16.msra.mxu0 0
        %1429 = vmatprep.subr.bf16.mxu0 0
        %1430 = vmatpush1.bf16.msra.mxu0 0
        %1431 = vmatprep.subr.bf16.mxu0 0
        %1432 = vmatpush1.bf16.msra.mxu0 0
        %1433 = vmatprep.subr.bf16.mxu0 0
        %1434 = vmatpush1.bf16.msra.mxu0 0
        %1435 = vmatprep.mubr.bf16.mxu0 0
        %1436 = vmatmul.mubr.bf16.gmra.mrb[0].mxu0 %v1398
        %v1437 = vpop.f32.mrb[0].mxu0
        %v1438 = vadd.f32 %v1339, %v1437
        %v1439 = vpop.f32.mrb[0].mxu0
        %v1440 = vadd.f32 %v1341, %v1439
        %v1441 = vpop.f32.mrb[0].mxu0
        %v1442 = vadd.f32 %v1343, %v1441
        %v1443 = vpop.f32.mrb[0].mxu0
        %v1444 = vadd.f32 %v1345, %v1443
        %1445 = vmatprep.mubr.bf16.mxu0 0
        %1446 = vmatmul.mubr.bf16.gmra.mrb[0].mxu0 %v1401
        %v1447 = vpop.f32.mrb[0].mxu0
        %v1448 = vadd.f32 %v1349, %v1447
        %v1449 = vpop.f32.mrb[0].mxu0
        %v1450 = vadd.f32 %v1351, %v1449
        %v1451 = vpop.f32.mrb[0].mxu0
        %v1452 = vadd.f32 %v1353, %v1451
        %v1453 = vpop.f32.mrb[0].mxu0
        %v1454 = vadd.f32 %v1355, %v1453
        %1455 = vdwg.mxu0
        %v1456 = vld [vmem:[%s5] sm:$0x3]
        %v1458 = vlaneseq
        %v1459 = vshrl.u32 %v1458, 7
        %v1460 = vsub.s32 0, %v1459
        %v1461 = vrot.slane %v1456, %v1460
        %v1462 = vlaneseq
        %v1463 = vshrl.u32 %v1462, 7
        %v1464 = vsub.s32 1, %v1463
        %v1465 = vrot.slane %v1456, %v1464
        %v1468 = vadd.f32 %v1438, %v1461
        %v1469 = vadd.f32 %v1440, %v1465
        %v1470 = vadd.f32 %v1442, %v1461
        %v1471 = vadd.f32 %v1444, %v1465
        %v1472 = vadd.f32 %v1448, %v1461
        %v1473 = vadd.f32 %v1450, %v1465
        %v1474 = vadd.f32 %v1452, %v1461
        %v1475 = vadd.f32 %v1454, %v1465
        %v1476 = vmax.f32 %v1468, 0.0
        %v1477 = vmax.f32 %v1469, 0.0
        %v1478 = vmax.f32 %v1470, 0.0
        %v1479 = vmax.f32 %v1471, 0.0
        %v1480 = vmax.f32 %v1472, 0.0
        %v1481 = vmax.f32 %v1473, 0.0
        %v1482 = vmax.f32 %v1474, 0.0
        %v1483 = vmax.f32 %v1475, 0.0
        %v1484 = vpack.c.bf16 %v1478, %v1476
        %v1485 = vpack.c.bf16 %v1479, %v1477
        %v1486 = vpack.c.bf16 %v1482, %v1480
        %v1487 = vpack.c.bf16 %v1483, %v1481
        %v1488 = vld [vmem:[%s6] sm:$0xf]
        %v1489 = vld [vmem:[%s6 + $0x4] sm:$0xf]
        %v1490 = vld [vmem:[%s6 + $0x8] sm:$0xf]
        %v1491 = vld [vmem:[%s6 + $0xc] sm:$0xf]
        %v1492 = vld [vmem:[%s6 + $0x10] sm:$0xf]
        %v1493 = vld [vmem:[%s6 + $0x14] sm:$0xf]
        %v1494 = vld [vmem:[%s6 + $0x18] sm:$0xf]
        %v1495 = vld [vmem:[%s6 + $0x1c] sm:$0xf]
        %v1496 = vld [vmem:[%s6 + $0x20] sm:$0xf]
        %v1497 = vld [vmem:[%s6 + $0x24] sm:$0xf]
        %v1498 = vld [vmem:[%s6 + $0x28] sm:$0xf]
        %v1499 = vld [vmem:[%s6 + $0x2c] sm:$0xf]
        %v1500 = vld [vmem:[%s6 + $0x30] sm:$0xf]
        %v1501 = vld [vmem:[%s6 + $0x34] sm:$0xf]
        %v1502 = vld [vmem:[%s6 + $0x38] sm:$0xf]
        %v1503 = vld [vmem:[%s6 + $0x3c] sm:$0xf]
        %v1504 = vld [vmem:[%s6 + $0x40] sm:$0xf]
        %v1505 = vld [vmem:[%s6 + $0x44] sm:$0xf]
        %v1506 = vld [vmem:[%s6 + $0x48] sm:$0xf]
        %v1507 = vld [vmem:[%s6 + $0x4c] sm:$0xf]
        %v1508 = vld [vmem:[%s6 + $0x50] sm:$0xf]
        %v1509 = vld [vmem:[%s6 + $0x54] sm:$0xf]
        %v1510 = vld [vmem:[%s6 + $0x58] sm:$0xf]
        %v1511 = vld [vmem:[%s6 + $0x5c] sm:$0xf]
        %v1512 = vld [vmem:[%s7] sm:$0x1]
        %v1514 = vlaneseq
        %v1515 = vshrl.u32 %v1514, 7
        %v1516 = vsub.s32 0, %v1515
        %v1517 = vrot.slane %v1512, %v1516
        %v1543 = vunpack.c.l.b16 %v1488
        %v1544 = vunpack.c.l.b16 %v1489
        %v1545 = vunpack.c.l.b16 %v1490
        %v1546 = vunpack.c.l.b16 %v1491
        %v1547 = vunpack.c.l.b16 %v1492
        %v1548 = vunpack.c.l.b16 %v1493
        %v1549 = vunpack.c.l.b16 %v1494
        %v1550 = vunpack.c.l.b16 %v1495
        %v1551 = vunpack.c.l.b16 %v1496
        %v1552 = vunpack.c.l.b16 %v1497
        %v1553 = vunpack.c.l.b16 %v1498
        %v1554 = vunpack.c.l.b16 %v1499
        %v1555 = vunpack.c.l.b16 %v1500
        %v1556 = vunpack.c.l.b16 %v1501
        %v1557 = vunpack.c.l.b16 %v1502
        %v1558 = vunpack.c.l.b16 %v1503
        %v1559 = vunpack.c.l.b16 %v1504
        %v1560 = vunpack.c.l.b16 %v1505
        %v1561 = vunpack.c.l.b16 %v1506
        %v1562 = vunpack.c.l.b16 %v1507
        %v1563 = vunpack.c.l.b16 %v1508
        %v1564 = vunpack.c.l.b16 %v1509
        %v1565 = vunpack.c.l.b16 %v1510
        %v1566 = vunpack.c.l.b16 %v1511
        %v1567 = vpack.c.b16 %v1544, %v1543
        %v1568 = vpack.c.b16 %v1546, %v1545
        %v1569 = vpack.c.b16 %v1548, %v1547
        %v1570 = vpack.c.b16 %v1550, %v1549
        %v1571 = vpack.c.b16 %v1552, %v1551
        %v1572 = vpack.c.b16 %v1554, %v1553
        %v1573 = vpack.c.b16 %v1556, %v1555
        %v1574 = vpack.c.b16 %v1558, %v1557
        %v1575 = vpack.c.b16 %v1560, %v1559
        %v1576 = vpack.c.b16 %v1562, %v1561
        %v1577 = vpack.c.b16 %v1564, %v1563
        %v1578 = vpack.c.b16 %v1566, %v1565
        %v1592 = vsel %vm811, %v1485, 0
        %v1595 = vsel %vm811, %v1487, 0
        %1597 = vmatprep.subr.bf16.mxu0 0
        %1598 = vmatpush1.bf16.msra.mxu0 %v1567
        %1599 = vmatprep.subr.bf16.mxu0 0
        %1600 = vmatpush1.bf16.msra.mxu0 %v1568
        %1601 = vmatprep.subr.bf16.mxu0 0
        %1602 = vmatpush1.bf16.msra.mxu0 %v1569
        %1603 = vmatprep.subr.bf16.mxu0 0
        %1604 = vmatpush1.bf16.msra.mxu0 %v1570
        %1605 = vmatprep.subr.bf16.mxu0 0
        %1606 = vmatpush1.bf16.msra.mxu0 %v1571
        %1607 = vmatprep.subr.bf16.mxu0 0
        %1608 = vmatpush1.bf16.msra.mxu0 %v1572
        %1609 = vmatprep.subr.bf16.mxu0 0
        %1610 = vmatpush1.bf16.msra.mxu0 %v1573
        %1611 = vmatprep.subr.bf16.mxu0 0
        %1612 = vmatpush1.bf16.msra.mxu0 %v1574
        %1613 = vmatprep.subr.bf16.mxu0 0
        %1614 = vmatpush1.bf16.msra.mxu0 %v1575
        %1615 = vmatprep.subr.bf16.mxu0 0
        %1616 = vmatpush1.bf16.msra.mxu0 %v1576
        %1617 = vmatprep.subr.bf16.mxu0 0
        %1618 = vmatpush1.bf16.msra.mxu0 %v1577
        %1619 = vmatprep.subr.bf16.mxu0 0
        %1620 = vmatpush1.bf16.msra.mxu0 %v1578
        %1621 = vmatprep.subr.bf16.mxu0 0
        %1622 = vmatpush1.bf16.msra.mxu0 0
        %1623 = vmatprep.subr.bf16.mxu0 0
        %1624 = vmatpush1.bf16.msra.mxu0 0
        %1625 = vmatprep.subr.bf16.mxu0 0
        %1626 = vmatpush1.bf16.msra.mxu0 0
        %1627 = vmatprep.subr.bf16.mxu0 0
        %1628 = vmatpush1.bf16.msra.mxu0 0
        %1629 = vmatprep.mubr.bf16.mxu0 %v1592
        %1630 = vmatmul.mubr.bf16.gmra.mrb[0].mxu0 %v1484
        %v1631 = vpop.f32.mrb[0].mxu0
        %v1632 = vadd.f32 %v1517, %v1631
        %v1633 = vpop.f32.mrb[0].mxu0
        %v1634 = vpop.f32.mrb[0].mxu0
        %v1635 = vadd.f32 %v1517, %v1634
        %v1636 = vpop.f32.mrb[0].mxu0
        %1637 = vmatprep.mubr.bf16.mxu0 %v1595
        %1638 = vmatmul.mubr.bf16.gmra.mrb[0].mxu0 %v1486
        %v1639 = vpop.f32.mrb[0].mxu0
        %v1640 = vadd.f32 %v1517, %v1639
        %v1641 = vpop.f32.mrb[0].mxu0
        %v1642 = vpop.f32.mrb[0].mxu0
        %v1643 = vadd.f32 %v1517, %v1642
        %v1644 = vpop.f32.mrb[0].mxu0
        %1645 = vdwg.mxu0
        %v1646 = vmax.f32 %v1632, 0.0
        %v1647 = vmax.f32 %v1635, 0.0
        %v1648 = vmax.f32 %v1640, 0.0
        %v1649 = vmax.f32 %v1643, 0.0
        %v1650 = vpack.c.bf16 %v1647, %v1646
        %v1651 = vpack.c.bf16 %v1649, %v1648
        %1652 = vst.msk [vmem:[#allocation3] sm:$0xff] %vm811, %v1650
        %1654 = vrot.lane.b32.xlu0 %v1651, 64
        %v1655 = vpop.permute.xlu0 %1654
        %1657 = vst.msk [vmem:[#allocation3] sm:$0xff] %vm1188, %v1655
        %v1658 = vld [vmem:[#allocation3] sm:$0xff]
        %v1659 = vld [vmem:[%s624] sm:$0xf]
        %v1660 = vld [vmem:[%s624 + $0x4] sm:$0xf]
        %v1661 = vld [vmem:[%s8] sm:$0xf]
        %v1662 = vld [vmem:[%s9] sm:$0x1]
        %v1664 = vlaneseq
        %v1665 = vshrl.u32 %v1664, 7
        %v1666 = vsub.s32 0, %v1665
        %v1667 = vrot.slane %v1662, %v1666
        %v1671 = vunpack.c.l.b16 %v1659
        %v1672 = vunpack.c.l.b16 %v1660
        %v1673 = vpack.c.b16 %v1672, %v1671
        %vm1674 = vcmask 56320
        %v1676 = vsel %vm1674, %v1673, 0
        %vm1678 = vcmask 1042432
        %vm1679 = vcmask 1043456
        %v1680 = vsel %vm1678, 4294967295, 65535
        %v1681 = vsel %vm1679, %v1680, 0
        %v1683 = vand.u32 %v1661, %v1681
        %1685 = vmatprep.subr.bf16.mxu0 0
        %1686 = vmatpush1.bf16.msra.mxu0 %v1683
        %1687 = vmatprep.subr.bf16.mxu0 0
        %1688 = vmatpush1.bf16.msra.mxu0 0
        %1689 = vmatprep.subr.bf16.mxu0 0
        %1690 = vmatpush1.bf16.msra.mxu0 0
        %1691 = vmatprep.subr.bf16.mxu0 0
        %1692 = vmatpush1.bf16.msra.mxu0 0
        %1693 = vmatprep.subr.bf16.mxu0 0
        %1694 = vmatpush1.bf16.msra.mxu0 0
        %1695 = vmatprep.subr.bf16.mxu0 0
        %1696 = vmatpush1.bf16.msra.mxu0 0
        %1697 = vmatprep.subr.bf16.mxu0 0
        %1698 = vmatpush1.bf16.msra.mxu0 0
        %1699 = vmatprep.subr.bf16.mxu0 0
        %1700 = vmatpush1.bf16.msra.mxu0 0
        %1701 = vmatprep.subr.bf16.mxu0 0
        %1702 = vmatpush1.bf16.msra.mxu0 0
        %1703 = vmatprep.subr.bf16.mxu0 0
        %1704 = vmatpush1.bf16.msra.mxu0 0
        %1705 = vmatprep.subr.bf16.mxu0 0
        %1706 = vmatpush1.bf16.msra.mxu0 0
        %1707 = vmatprep.subr.bf16.mxu0 0
        %1708 = vmatpush1.bf16.msra.mxu0 0
        %1709 = vmatprep.subr.bf16.mxu0 0
        %1710 = vmatpush1.bf16.msra.mxu0 0
        %1711 = vmatprep.subr.bf16.mxu0 0
        %1712 = vmatpush1.bf16.msra.mxu0 0
        %1713 = vmatprep.subr.bf16.mxu0 0
        %1714 = vmatpush1.bf16.msra.mxu0 0
        %1715 = vmatprep.subr.bf16.mxu0 0
        %1716 = vmatpush1.bf16.msra.mxu0 0
        %1717 = vmatprep.mubr.bf16.mxu0 0
        %1718 = vmatmul.mubr.bf16.gmra.mrb[0].mxu0 %v1676
        %v1719 = vpop.f32.mrb[0].mxu0
        %v1720 = vadd.f32 %v1667, %v1719
        %v1721 = vpop.f32.mrb[0].mxu0
        %v1722 = vpop.f32.mrb[0].mxu0
        %v1723 = vadd.f32 %v1667, %v1722
        %v1724 = vpop.f32.mrb[0].mxu0
        %1725 = vdwg.mxu0
        %v1726 = vmax.f32 %v1720, 0.0
        %v1727 = vmax.f32 %v1723, 0.0
        %v1728 = vpack.c.bf16 %v1727, %v1726
        %v1729 = vld [vmem:[%s10] sm:$0xf]
        %v1730 = vld [vmem:[%s10 + $0x4] sm:$0xf]
        %v1731 = vld [vmem:[%s10 + $0x8] sm:$0xf]
        %v1732 = vld [vmem:[%s10 + $0xc] sm:$0xf]
        %v1733 = vld [vmem:[%s10 + $0x10] sm:$0xf]
        %v1734 = vld [vmem:[%s10 + $0x14] sm:$0xf]
        %v1735 = vld [vmem:[%s10 + $0x18] sm:$0xf]
        %v1736 = vld [vmem:[%s10 + $0x1c] sm:$0xf]
        %v1737 = vld [vmem:[%s10 + $0x20] sm:$0xf]
        %v1738 = vld [vmem:[%s10 + $0x24] sm:$0xf]
        %v1739 = vld [vmem:[%s10 + $0x28] sm:$0xf]
        %v1740 = vld [vmem:[%s10 + $0x2c] sm:$0xf]
        %v1741 = vld [vmem:[%s10 + $0x30] sm:$0xf]
        %v1742 = vld [vmem:[%s10 + $0x34] sm:$0xf]
        %v1743 = vld [vmem:[%s10 + $0x38] sm:$0xf]
        %v1744 = vld [vmem:[%s10 + $0x3c] sm:$0xf]
        %v1745 = vld [vmem:[%s11] sm:$0x1]
        %v1747 = vlaneseq
        %v1748 = vshrl.u32 %v1747, 7
        %v1749 = vsub.s32 0, %v1748
        %v1750 = vrot.slane %v1745, %v1749
        %v1768 = vunpack.c.l.b16 %v1729
        %v1769 = vunpack.c.l.b16 %v1730
        %v1770 = vunpack.c.l.b16 %v1731
        %v1771 = vunpack.c.l.b16 %v1732
        %v1772 = vunpack.c.l.b16 %v1733
        %v1773 = vunpack.c.l.b16 %v1734
        %v1774 = vunpack.c.l.b16 %v1735
        %v1775 = vunpack.c.l.b16 %v1736
        %v1776 = vunpack.c.l.b16 %v1737
        %v1777 = vunpack.c.l.b16 %v1738
        %v1778 = vunpack.c.l.b16 %v1739
        %v1779 = vunpack.c.l.b16 %v1740
        %v1780 = vunpack.c.l.b16 %v1741
        %v1781 = vunpack.c.l.b16 %v1742
        %v1782 = vunpack.c.l.b16 %v1743
        %v1783 = vunpack.c.l.b16 %v1744
        %v1784 = vpack.c.b16 %v1769, %v1768
        %v1785 = vpack.c.b16 %v1771, %v1770
        %v1786 = vpack.c.b16 %v1773, %v1772
        %v1787 = vpack.c.b16 %v1775, %v1774
        %v1788 = vpack.c.b16 %v1777, %v1776
        %v1789 = vpack.c.b16 %v1779, %v1778
        %v1790 = vpack.c.b16 %v1781, %v1780
        %v1791 = vpack.c.b16 %v1783, %v1782
        %1800 = vmatprep.subr.bf16.mxu0 0
        %1801 = vmatpush1.bf16.msra.mxu0 %v1784
        %1802 = vmatprep.subr.bf16.mxu0 0
        %1803 = vmatpush1.bf16.msra.mxu0 %v1785
        %1804 = vmatprep.subr.bf16.mxu0 0
        %1805 = vmatpush1.bf16.msra.mxu0 %v1786
        %1806 = vmatprep.subr.bf16.mxu0 0
        %1807 = vmatpush1.bf16.msra.mxu0 %v1787
        %1808 = vmatprep.subr.bf16.mxu0 0
        %1809 = vmatpush1.bf16.msra.mxu0 %v1788
        %1810 = vmatprep.subr.bf16.mxu0 0
        %1811 = vmatpush1.bf16.msra.mxu0 %v1789
        %1812 = vmatprep.subr.bf16.mxu0 0
        %1813 = vmatpush1.bf16.msra.mxu0 %v1790
        %1814 = vmatprep.subr.bf16.mxu0 0
        %1815 = vmatpush1.bf16.msra.mxu0 %v1791
        %1816 = vmatprep.subr.bf16.mxu0 0
        %1817 = vmatpush1.bf16.msra.mxu0 0
        %1818 = vmatprep.subr.bf16.mxu0 0
        %1819 = vmatpush1.bf16.msra.mxu0 0
        %1820 = vmatprep.subr.bf16.mxu0 0
        %1821 = vmatpush1.bf16.msra.mxu0 0
        %1822 = vmatprep.subr.bf16.mxu0 0
        %1823 = vmatpush1.bf16.msra.mxu0 0
        %1824 = vmatprep.subr.bf16.mxu0 0
        %1825 = vmatpush1.bf16.msra.mxu0 0
        %1826 = vmatprep.subr.bf16.mxu0 0
        %1827 = vmatpush1.bf16.msra.mxu0 0
        %1828 = vmatprep.subr.bf16.mxu0 0
        %1829 = vmatpush1.bf16.msra.mxu0 0
        %1830 = vmatprep.subr.bf16.mxu0 0
        %1831 = vmatpush1.bf16.msra.mxu0 0
        %1832 = vmatprep.mubr.bf16.mxu0 0
        %1833 = vmatmul.mubr.bf16.gmra.mrb[0].mxu0 %v1728
        %v1834 = vpop.f32.mrb[0].mxu0
        %v1835 = vadd.f32 %v1750, %v1834
        %v1836 = vpop.f32.mrb[0].mxu0
        %v1837 = vpop.f32.mrb[0].mxu0
        %v1838 = vadd.f32 %v1750, %v1837
        %v1839 = vpop.f32.mrb[0].mxu0
        %1840 = vdwg.mxu0
        %v1841 = vmax.f32 %v1835, 0.0
        %v1842 = vmax.f32 %v1838, 0.0
        %v1843 = vpack.c.bf16 %v1842, %v1841
        %v1844 = vld [vmem:[%s12] sm:$0xf]
        %v1845 = vld [vmem:[%s12 + $0x4] sm:$0xf]
        %v1846 = vld [vmem:[%s12 + $0x8] sm:$0xf]
        %v1847 = vld [vmem:[%s12 + $0xc] sm:$0xf]
        %v1848 = vld [vmem:[%s12 + $0x10] sm:$0xf]
        %v1849 = vld [vmem:[%s12 + $0x14] sm:$0xf]
        %v1850 = vld [vmem:[%s12 + $0x18] sm:$0xf]
        %v1851 = vld [vmem:[%s12 + $0x1c] sm:$0xf]
        %v1852 = vld [vmem:[%s12 + $0x20] sm:$0xf]
        %v1853 = vld [vmem:[%s12 + $0x24] sm:$0xf]
        %v1854 = vld [vmem:[%s12 + $0x28] sm:$0xf]
        %v1855 = vld [vmem:[%s12 + $0x2c] sm:$0xf]
        %v1856 = vld [vmem:[%s12 + $0x30] sm:$0xf]
        %v1857 = vld [vmem:[%s12 + $0x34] sm:$0xf]
        %v1858 = vld [vmem:[%s12 + $0x38] sm:$0xf]
        %v1859 = vld [vmem:[%s12 + $0x3c] sm:$0xf]
        %v1860 = vld [vmem:[%s12 + $0x40] sm:$0xf]
        %v1861 = vld [vmem:[%s12 + $0x44] sm:$0xf]
        %v1862 = vld [vmem:[%s12 + $0x48] sm:$0xf]
        %v1863 = vld [vmem:[%s12 + $0x4c] sm:$0xf]
        %v1864 = vld [vmem:[%s12 + $0x50] sm:$0xf]
        %v1865 = vld [vmem:[%s12 + $0x54] sm:$0xf]
        %v1866 = vld [vmem:[%s12 + $0x58] sm:$0xf]
        %v1867 = vld [vmem:[%s12 + $0x5c] sm:$0xf]
        %v1884 = vunpack.c.l.b16 %v1852
        %v1885 = vunpack.c.l.b16 %v1853
        %v1886 = vunpack.c.l.b16 %v1854
        %v1887 = vunpack.c.l.b16 %v1855
        %v1888 = vunpack.c.l.b16 %v1856
        %v1889 = vunpack.c.l.b16 %v1857
        %v1890 = vunpack.c.l.b16 %v1858
        %v1891 = vunpack.c.l.b16 %v1859
        %v1892 = vunpack.c.l.b16 %v1860
        %v1893 = vunpack.c.l.b16 %v1861
        %v1894 = vunpack.c.l.b16 %v1862
        %v1895 = vunpack.c.l.b16 %v1863
        %v1896 = vunpack.c.l.b16 %v1864
        %v1897 = vunpack.c.l.b16 %v1865
        %v1898 = vunpack.c.l.b16 %v1866
        %v1899 = vunpack.c.l.b16 %v1867
        %v1900 = vpack.c.b16 %v1885, %v1884
        %v1901 = vpack.c.b16 %v1887, %v1886
        %v1902 = vpack.c.b16 %v1889, %v1888
        %v1903 = vpack.c.b16 %v1891, %v1890
        %v1904 = vpack.c.b16 %v1893, %v1892
        %v1905 = vpack.c.b16 %v1895, %v1894
        %v1906 = vpack.c.b16 %v1897, %v1896
        %v1907 = vpack.c.b16 %v1899, %v1898
        %1916 = vmatprep.subr.bf16.mxu0 0
        %1917 = vmatpush1.bf16.msra.mxu0 %v1900
        %1918 = vmatprep.subr.bf16.mxu0 0
        %1919 = vmatpush1.bf16.msra.mxu0 %v1901
        %1920 = vmatprep.subr.bf16.mxu0 0
        %1921 = vmatpush1.bf16.msra.mxu0 %v1902
        %1922 = vmatprep.subr.bf16.mxu0 0
        %1923 = vmatpush1.bf16.msra.mxu0 %v1903
        %1924 = vmatprep.subr.bf16.mxu0 0
        %1925 = vmatpush1.bf16.msra.mxu0 %v1904
        %1926 = vmatprep.subr.bf16.mxu0 0
        %1927 = vmatpush1.bf16.msra.mxu0 %v1905
        %1928 = vmatprep.subr.bf16.mxu0 0
        %1929 = vmatpush1.bf16.msra.mxu0 %v1906
        %1930 = vmatprep.subr.bf16.mxu0 0
        %1931 = vmatpush1.bf16.msra.mxu0 %v1907
        %1932 = vmatprep.subr.bf16.mxu0 0
        %1933 = vmatpush1.bf16.msra.mxu0 0
        %1934 = vmatprep.subr.bf16.mxu0 0
        %1935 = vmatpush1.bf16.msra.mxu0 0
        %1936 = vmatprep.subr.bf16.mxu0 0
        %1937 = vmatpush1.bf16.msra.mxu0 0
        %1938 = vmatprep.subr.bf16.mxu0 0
        %1939 = vmatpush1.bf16.msra.mxu0 0
        %1940 = vmatprep.subr.bf16.mxu0 0
        %1941 = vmatpush1.bf16.msra.mxu0 0
        %1942 = vmatprep.subr.bf16.mxu0 0
        %1943 = vmatpush1.bf16.msra.mxu0 0
        %1944 = vmatprep.subr.bf16.mxu0 0
        %1945 = vmatpush1.bf16.msra.mxu0 0
        %1946 = vmatprep.subr.bf16.mxu0 0
        %1947 = vmatpush1.bf16.msra.mxu0 0
        %1948 = vmatprep.mubr.bf16.mxu0 0
        %1949 = vmatmul.mubr.bf16.gmra.mrb[0].mxu0 %v1658
        %v1950 = vpop.f32.mrb[0].mxu0
        %v1951 = vadd.f32 0.0, %v1950
        %v1952 = vpop.f32.mrb[0].mxu0
        %v1953 = vpop.f32.mrb[0].mxu0
        %v1954 = vadd.f32 0.0, %v1953
        %v1955 = vpop.f32.mrb[0].mxu0
        %1956 = vdwg.mxu0
        %v1965 = vunpack.c.l.b16 %v1844
        %v1966 = vunpack.c.l.b16 %v1845
        %v1967 = vunpack.c.l.b16 %v1846
        %v1968 = vunpack.c.l.b16 %v1847
        %v1969 = vunpack.c.l.b16 %v1848
        %v1970 = vunpack.c.l.b16 %v1849
        %v1971 = vunpack.c.l.b16 %v1850
        %v1972 = vunpack.c.l.b16 %v1851
        %v1973 = vpack.c.b16 %v1966, %v1965
        %v1974 = vpack.c.b16 %v1968, %v1967
        %v1975 = vpack.c.b16 %v1970, %v1969
        %v1976 = vpack.c.b16 %v1972, %v1971
        %v1982 = vsel %vm811, %v1843, 0
        %1984 = vmatprep.subr.bf16.mxu0 0
        %1985 = vmatpush1.bf16.msra.mxu0 %v1973
        %1986 = vmatprep.subr.bf16.mxu0 0
        %1987 = vmatpush1.bf16.msra.mxu0 %v1974
        %1988 = vmatprep.subr.bf16.mxu0 0
        %1989 = vmatpush1.bf16.msra.mxu0 %v1975
        %1990 = vmatprep.subr.bf16.mxu0 0
        %1991 = vmatpush1.bf16.msra.mxu0 %v1976
        %1992 = vmatprep.subr.bf16.mxu0 0
        %1993 = vmatpush1.bf16.msra.mxu0 0
        %1994 = vmatprep.subr.bf16.mxu0 0
        %1995 = vmatpush1.bf16.msra.mxu0 0
        %1996 = vmatprep.subr.bf16.mxu0 0
        %1997 = vmatpush1.bf16.msra.mxu0 0
        %1998 = vmatprep.subr.bf16.mxu0 0
        %1999 = vmatpush1.bf16.msra.mxu0 0
        %2000 = vmatprep.subr.bf16.mxu0 0
        %2001 = vmatpush1.bf16.msra.mxu0 0
        %2002 = vmatprep.subr.bf16.mxu0 0
        %2003 = vmatpush1.bf16.msra.mxu0 0
        %2004 = vmatprep.subr.bf16.mxu0 0
        %2005 = vmatpush1.bf16.msra.mxu0 0
        %2006 = vmatprep.subr.bf16.mxu0 0
        %2007 = vmatpush1.bf16.msra.mxu0 0
        %2008 = vmatprep.subr.bf16.mxu0 0
        %2009 = vmatpush1.bf16.msra.mxu0 0
        %2010 = vmatprep.subr.bf16.mxu0 0
        %2011 = vmatpush1.bf16.msra.mxu0 0
        %2012 = vmatprep.subr.bf16.mxu0 0
        %2013 = vmatpush1.bf16.msra.mxu0 0
        %2014 = vmatprep.subr.bf16.mxu0 0
        %2015 = vmatpush1.bf16.msra.mxu0 0
        %2016 = vmatprep.mubr.bf16.mxu0 0
        %2017 = vmatmul.mubr.bf16.gmra.mrb[0].mxu0 %v1982
        %v2018 = vpop.f32.mrb[0].mxu0
        %v2019 = vadd.f32 %v1951, %v2018
        %v2020 = vpop.f32.mrb[0].mxu0
        %v2021 = vpop.f32.mrb[0].mxu0
        %v2022 = vadd.f32 %v1954, %v2021
        %v2023 = vpop.f32.mrb[0].mxu0
        %2024 = vdwg.mxu0
        %v2025 = vld [vmem:[%s13] sm:$0x1]
        %v2027 = vlaneseq
        %v2028 = vshrl.u32 %v2027, 7
        %v2029 = vsub.s32 0, %v2028
        %v2030 = vrot.slane %v2025, %v2029
        %v2032 = vadd.f32 %v2019, %v2030
        %v2033 = vadd.f32 %v2022, %v2030
        %v2034 = vmax.f32 %v2032, 0.0
        %v2035 = vmax.f32 %v2033, 0.0
        %v2036 = vpack.c.bf16 %v2035, %v2034
        %v2037 = vld [vmem:[%s14] sm:$0xf]
        %v2038 = vld [vmem:[%s14 + $0x4] sm:$0xf]
        %v2039 = vld [vmem:[%s14 + $0x8] sm:$0xf]
        %v2040 = vld [vmem:[%s14 + $0xc] sm:$0xf]
        %v2041 = vld [vmem:[%s14 + $0x10] sm:$0xf]
        %v2042 = vld [vmem:[%s14 + $0x14] sm:$0xf]
        %v2043 = vld [vmem:[%s14 + $0x18] sm:$0xf]
        %v2044 = vld [vmem:[%s14 + $0x1c] sm:$0xf]
        %v2045 = vld [vmem:[%s14 + $0x20] sm:$0xf]
        %v2046 = vld [vmem:[%s14 + $0x24] sm:$0xf]
        %v2047 = vld [vmem:[%s14 + $0x28] sm:$0xf]
        %v2048 = vld [vmem:[%s14 + $0x2c] sm:$0xf]
        %v2049 = vld [vmem:[%s14 + $0x30] sm:$0xf]
        %v2050 = vld [vmem:[%s14 + $0x34] sm:$0xf]
        %v2051 = vld [vmem:[%s14 + $0x38] sm:$0xf]
        %v2052 = vld [vmem:[%s14 + $0x3c] sm:$0xf]
        %v2053 = vld [vmem:[%s15] sm:$0x1]
        %v2055 = vlaneseq
        %v2056 = vshrl.u32 %v2055, 7
        %v2057 = vsub.s32 0, %v2056
        %v2058 = vrot.slane %v2053, %v2057
        %v2076 = vunpack.c.l.b16 %v2037
        %v2077 = vunpack.c.l.b16 %v2038
        %v2078 = vunpack.c.l.b16 %v2039
        %v2079 = vunpack.c.l.b16 %v2040
        %v2080 = vunpack.c.l.b16 %v2041
        %v2081 = vunpack.c.l.b16 %v2042
        %v2082 = vunpack.c.l.b16 %v2043
        %v2083 = vunpack.c.l.b16 %v2044
        %v2084 = vunpack.c.l.b16 %v2045
        %v2085 = vunpack.c.l.b16 %v2046
        %v2086 = vunpack.c.l.b16 %v2047
        %v2087 = vunpack.c.l.b16 %v2048
        %v2088 = vunpack.c.l.b16 %v2049
        %v2089 = vunpack.c.l.b16 %v2050
        %v2090 = vunpack.c.l.b16 %v2051
        %v2091 = vunpack.c.l.b16 %v2052
        %v2092 = vpack.c.b16 %v2077, %v2076
        %v2093 = vpack.c.b16 %v2079, %v2078
        %v2094 = vpack.c.b16 %v2081, %v2080
        %v2095 = vpack.c.b16 %v2083, %v2082
        %v2096 = vpack.c.b16 %v2085, %v2084
        %v2097 = vpack.c.b16 %v2087, %v2086
        %v2098 = vpack.c.b16 %v2089, %v2088
        %v2099 = vpack.c.b16 %v2091, %v2090
        %2108 = vmatprep.subr.bf16.mxu0 0
        %2109 = vmatpush1.bf16.msra.mxu0 %v2092
        %2110 = vmatprep.subr.bf16.mxu0 0
        %2111 = vmatpush1.bf16.msra.mxu0 %v2093
        %2112 = vmatprep.subr.bf16.mxu0 0
        %2113 = vmatpush1.bf16.msra.mxu0 %v2094
        %2114 = vmatprep.subr.bf16.mxu0 0
        %2115 = vmatpush1.bf16.msra.mxu0 %v2095
        %2116 = vmatprep.subr.bf16.mxu0 0
        %2117 = vmatpush1.bf16.msra.mxu0 %v2096
        %2118 = vmatprep.subr.bf16.mxu0 0
        %2119 = vmatpush1.bf16.msra.mxu0 %v2097
        %2120 = vmatprep.subr.bf16.mxu0 0
        %2121 = vmatpush1.bf16.msra.mxu0 %v2098
        %2122 = vmatprep.subr.bf16.mxu0 0
        %2123 = vmatpush1.bf16.msra.mxu0 %v2099
        %2124 = vmatprep.subr.bf16.mxu0 0
        %2125 = vmatpush1.bf16.msra.mxu0 0
        %2126 = vmatprep.subr.bf16.mxu0 0
        %2127 = vmatpush1.bf16.msra.mxu0 0
        %2128 = vmatprep.subr.bf16.mxu0 0
        %2129 = vmatpush1.bf16.msra.mxu0 0
        %2130 = vmatprep.subr.bf16.mxu0 0
        %2131 = vmatpush1.bf16.msra.mxu0 0
        %2132 = vmatprep.subr.bf16.mxu0 0
        %2133 = vmatpush1.bf16.msra.mxu0 0
        %2134 = vmatprep.subr.bf16.mxu0 0
        %2135 = vmatpush1.bf16.msra.mxu0 0
        %2136 = vmatprep.subr.bf16.mxu0 0
        %2137 = vmatpush1.bf16.msra.mxu0 0
        %2138 = vmatprep.subr.bf16.mxu0 0
        %2139 = vmatpush1.bf16.msra.mxu0 0
        %2140 = vmatprep.mubr.bf16.mxu0 0
        %2141 = vmatmul.mubr.bf16.gmra.mrb[0].mxu0 %v2036
        %v2142 = vpop.f32.mrb[0].mxu0
        %v2143 = vadd.f32 %v2058, %v2142
        %v2144 = vpop.f32.mrb[0].mxu0
        %v2145 = vpop.f32.mrb[0].mxu0
        %v2146 = vadd.f32 %v2058, %v2145
        %v2147 = vpop.f32.mrb[0].mxu0
        %2148 = vdwg.mxu0
        %2149 = vst [vmem:[%s630] sm:$0xff] %v2143
        %2150 = vst [vmem:[%s630 + $0x8] sm:$0xff] %v2146
        %s2151 = smul.u32 2, %s27
        %p2152 = scmp.lt.s32.totalorder %s2151, 3
        %s2153 = scalar_select %p2152, %s2151, 3
        %s2154 = smul.addr %s2153, 8
        %s2155 = scalar_lea.vmem %s16, %s2154
        // Predicated region
        $region126: #{recursive_layer_forward.1} parent=120 // pred_check
          %p2156 = pneg %p391
        $region127: #{recursive_layer_forward.1} parent=120 // pred_check_branch
          %2158 = sbr.rel (%p2156) target = $region129
        $region128: #{recursive_layer_forward.1} parent=120 // pred_region
          %s2159 = smul.u32 2, %s27
        $region129: #{recursive_layer_forward.1} parent=120 // pred_fallthru
          _
      $region121: #{recursive_layer_forward.1} parent=5 // pred_fallthru
        _
      %p2160 = scmp.le.s32.totalorder 2, %s22
      // Predicated region
      $region130: #{recursive_layer_forward.1} parent=5 // pred_check
        %p2161 = pneg %p2160
      $region131: #{recursive_layer_forward.1} parent=5 // pred_check_branch
        %2163 = sbr.rel (%p2161) target = $region133
      $region132: #{recursive_layer_forward.1} parent=5 // pred_region
        %s2164 = ssub.s32 %s22, 2
        // Predicated region
        $region134: #{recursive_layer_forward.1} parent=132 // pred_check
          %p2165 = pneg %p397
        $region135: #{recursive_layer_forward.1} parent=132 // pred_check_branch
          %2167 = sbr.rel (%p2165) target = $region137
        $region136: #{recursive_layer_forward.1} parent=132 // pred_region
          %s2168 = smul.u32 2, %s28
          %p2169 = scmp.lt.s32.totalorder %s2168, 3
          %s2170 = scalar_select %p2169, %s2168, 3
          %s2171 = smul.addr %s2170, 8
          %s2172 = scalar_lea.vmem %s16, %s2171
        $region137: #{recursive_layer_forward.1} parent=132 // pred_fallthru
          _
      $region133: #{recursive_layer_forward.1} parent=5 // pred_fallthru
        _
    $region6: #{recursive_layer_forward.1} parent=1 // loop_footer
      %s26 = sadd.s32 1, %s22
    $region7: #{recursive_layer_forward.1} parent=1 // loop_footer_branch
      %21 = sbr.rel target = $region3
    $region8: #{recursive_layer_forward.1} parent=1 // loop_exit
      _

</llo_original>
